<compile_context>
chip_gen: v5e
topology: v5e:2x2
jax: 0.10.0
libtpu: 0.0.40
codegen_flags: <defaults>
</compile_context>

<pallas_src>
import functools

import jax
import jax.numpy as jnp
from jax import lax
from jax.experimental import pallas as pl
from jax.experimental.pallas import tpu as pltpu

REF_PRECISION = lax.Precision.HIGHEST  # used only by the pure-JAX reference


def cnn_kernel(xw_ref, w1_ref, w2_ref, b2_ref, wf1_ref, bf1_ref, wf2_ref, bf2_ref,
               out_ref, *, b_tile, n_l4):
    """All activations are (channels, rows) with rows r = l4 * b_tile + sample on lanes."""
    m1 = b_tile * n_l4
    f32 = jnp.float32

    # ---- conv1 (1->64, k=3, pad=1), bias folded into the K=8 ones-row ------------------
    # w1: (256, 8) block-structured (block d = output length position 4*l4 + d),
    # xw: (8, m1) lane-dense im2col windows (rows 0..5 taps, row 6 ones, row 7 zero).
    h1 = jnp.dot(w1_ref[...], xw_ref[0], preferred_element_type=f32)        # (256, m1)

    # ---- maxpool1 (k=2,s=2) + ReLU (relu commutes with max) ----------------------------
    p1e = jnp.maximum(jnp.maximum(h1[0:64, :], h1[64:128, :]), 0.0)         # pos 2*l4
    p1o = jnp.maximum(jnp.maximum(h1[128:192, :], h1[192:256, :]), 0.0)     # pos 2*l4+1
    # dropout1: identity at inference

    # ---- conv2 (64->128, k=3, pad=1) as accumulating K=64 matmuls (no im2col build) -----
    h2e = (jnp.dot(w2_ref[1], p1e, preferred_element_type=f32)
           + jnp.dot(w2_ref[2], p1o, preferred_element_type=f32))           # even l2
    h2o = (jnp.dot(w2_ref[0], p1e, preferred_element_type=f32)
           + jnp.dot(w2_ref[1], p1o, preferred_element_type=f32))           # odd  l2
    if n_l4 > 1:
        zc = jnp.zeros((64, b_tile), f32)
        p1o_prev = jnp.concatenate([zc, p1o[:, :m1 - b_tile]], axis=1)      # p1o at l4-1
        p1e_next = jnp.concatenate([p1e[:, b_tile:], zc], axis=1)           # p1e at l4+1
        h2e = h2e + jnp.dot(w2_ref[0], p1o_prev, preferred_element_type=f32)
        h2o = h2o + jnp.dot(w2_ref[2], p1e_next, preferred_element_type=f32)

    # ---- maxpool2 + bias + ReLU ----------------------------------------------------------
    p2 = jnp.maximum(jnp.maximum(h2e, h2o) + b2_ref[...], 0.0)              # (128, m1)
    # dropout2: identity at inference

    # ---- fc1 + ReLU (channel-major flatten folded into pre-permuted wf1[l] = (64,128)) ---
    acc = jnp.dot(wf1_ref[0], p2[:, 0:b_tile], preferred_element_type=f32)
    for l in range(1, n_l4):
        acc = acc + jnp.dot(wf1_ref[l], p2[:, l * b_tile:(l + 1) * b_tile],
                            preferred_element_type=f32)
    f1 = jnp.maximum(acc + bf1_ref[...], 0.0)                               # (64, b_tile)

    # ---- fc2 + sigmoid, stored as a lane-dense (1, b_tile) row ---------------------------
    # wf2 is sublane-padded to (8, 64) (row 0 real) so the matmul shapes stay tile-aligned.
    logit = jnp.dot(wf2_ref[...], f1, preferred_element_type=f32) + bf2_ref[...]
    out_ref[0] = 1.0 / (1.0 + jnp.exp(-logit[0:1, :]))


def _round_up(n, m):
    return ((n + m - 1) // m) * m


def _choose_b_tile(batch):
    """>=2 grid steps when the batch allows it (feeds both TCs on dual-core chips)."""
    b8 = _round_up(max(batch, 1), 8)
    if b8 >= 256:
        return 128
    if b8 >= 16:
        return _round_up((b8 + 1) // 2, 8)
    return b8


def cnn_forward_pallas(x, params):
    """x: (B, 1, L) float32 (PyTorch NCL). Returns (B, 1)."""
    conv1_w, conv1_b, conv2_w, conv2_b, fc1_w, fc1_b, fc2_w, fc2_b = params
    B, Cin, L = x.shape
    assert Cin == 1 and L % 4 == 0
    L4 = L // 4
    b_tile = _choose_b_tile(B)
    B_pad = _round_up(B, b_tile)
    n_tiles = B_pad // b_tile
    m1 = b_tile * L4
    f32 = jnp.float32

    # ---- glue: layout / weight prep only (plain JAX, cheap) ------------------------------
    # Lane-dense im2col windows: xw[t, k, l4*b_tile + b] = xpad[sample, 4*l4 + k], k=0..5,
    # row 6 = ones (conv1 bias), row 7 = zeros.
    x2 = jnp.pad(x[:, 0, :].astype(f32), ((0, B_pad - B), (1, 1)))           # (B_pad, L+2)
    widx = 4 * jnp.arange(L4)[:, None] + jnp.arange(6)[None, :]              # (L4, 6)
    xg = x2[:, widx]                                                         # (B_pad, L4, 6)
    xg = (xg.reshape(n_tiles, b_tile, L4, 6)
            .transpose(0, 3, 2, 1)                                           # (n_tiles,6,L4,b_tile)
            .reshape(n_tiles, 6, m1))
    xw = jnp.concatenate(
        [xg, jnp.ones((n_tiles, 1, m1), f32), jnp.zeros((n_tiles, 1, m1), f32)], axis=1)

    # conv1 weight as (256, 8): rows d*64+co compute length position 4*l4+d; col 6 = bias.
    w1kc = conv1_w[:, 0, :].astype(f32)                                      # (64, 3)
    w1t = jnp.zeros((256, 8), f32)
    for d in range(4):
        w1t = w1t.at[d * 64:(d + 1) * 64, d:d + 3].set(w1kc)
    w1t = w1t.at[:, 6].set(jnp.tile(conv1_b.astype(f32), 4))

    w2t = jnp.transpose(conv2_w.astype(f32), (2, 0, 1))                      # (3, 128, 64)
    b2c = conv2_b.astype(f32).reshape(128, 1)
    # fc1_w[j, c*L4 + l]  ->  wf1t[l, j, c]  (reproduces PyTorch channel-major flatten)
    wf1t = jnp.transpose(fc1_w.astype(f32).reshape(64, 128, L4), (2, 0, 1))  # (L4, 64, 128)
    bf1c = fc1_b.astype(f32).reshape(64, 1)
    wf2p = jnp.zeros((8, 64), f32).at[0].set(fc2_w.astype(f32)[0])           # sublane-pad 1->8
    bf2c = fc2_b.astype(f32).reshape(1, 1)

    full = lambda a: pl.BlockSpec(a.shape, lambda *_: (0,) * a.ndim)

    out = pl.pallas_call(
        functools.partial(cnn_kernel, b_tile=b_tile, n_l4=L4),
        out_shape=jax.ShapeDtypeStruct((n_tiles, 1, b_tile), f32),
        grid_spec=pltpu.PrefetchScalarGridSpec(
            num_scalar_prefetch=0,
            grid=(n_tiles,),
            in_specs=[
                pl.BlockSpec((1, 8, m1), lambda i: (i, 0, 0)),               # im2col windows
                full(w1t), full(w2t), full(b2c),
                full(wf1t), full(bf1c), full(wf2p), full(bf2c),
            ],
            out_specs=pl.BlockSpec((1, 1, b_tile), lambda i: (i, 0, 0)),
        ),
        compiler_params=pltpu.CompilerParams(dimension_semantics=("parallel",)),
    )(xw, w1t, w2t, b2c, wf1t, bf1c, wf2p, bf2c)
    return out.reshape(B_pad, 1)[:B]


def cnn_forward_ref(x, params):
    """Pure-JAX f32 reference mirroring the PyTorch forward (eval mode)."""
    conv1_w, conv1_b, conv2_w, conv2_b, fc1_w, fc1_b, fc2_w, fc2_b = params
    B, _, L = x.shape
    dn = ("NCH", "OIH", "NCH")
    h1 = lax.conv_general_dilated(x, conv1_w, (1,), ((1, 1),), dimension_numbers=dn,
                                  precision=REF_PRECISION) + conv1_b[None, :, None]
    h1 = jnp.maximum(h1, 0.0)
    p1 = h1.reshape(B, 64, L // 2, 2).max(-1)
    h2 = lax.conv_general_dilated(p1, conv2_w, (1,), ((1, 1),), dimension_numbers=dn,
                                  precision=REF_PRECISION) + conv2_b[None, :, None]
    h2 = jnp.maximum(h2, 0.0)
    p2 = h2.reshape(B, 128, L // 4, 2).max(-1)
    flat = p2.reshape(B, -1)                                   # channel-major flatten (NCL)
    f1 = jnp.maximum(flat @ fc1_w.T + fc1_b, 0.0)
    return jax.nn.sigmoid(f1 @ fc2_w.T + fc2_b)


if __name__ == "__main__":
    B, input_size = 2, 16            # flat_size = 128 * (16 // 4) = 512
    key = jax.random.PRNGKey(0)
    ks = jax.random.split(key, 9)

    x = jax.random.normal(ks[0], (B, 1, input_size), jnp.float32)
    params = (
        jax.random.normal(ks[1], (64, 1, 3), jnp.float32) * 0.2,      # conv1.weight
        jax.random.normal(ks[2], (64,), jnp.float32) * 0.1,           # conv1.bias
        jax.random.normal(ks[3], (128, 64, 3), jnp.float32) * 0.05,   # conv2.weight
        jax.random.normal(ks[4], (128,), jnp.float32) * 0.1,          # conv2.bias
        jax.random.normal(ks[5], (64, 128 * (input_size // 4)), jnp.float32) * 0.03,  # fc1.weight
        jax.random.normal(ks[6], (64,), jnp.float32) * 0.1,           # fc1.bias
        jax.random.normal(ks[7], (1, 64), jnp.float32) * 0.1,         # fc2.weight
        jax.random.normal(ks[8], (1,), jnp.float32) * 0.1,            # fc2.bias
    )

    out = jax.block_until_ready(cnn_forward_pallas(x, params))
    ref = jax.block_until_ready(cnn_forward_ref(x, params))

    assert out.shape == (B, 1), out.shape
    # default-precision (bf16 MXU) kernel vs f32 reference: sigmoid outputs agree to ~1e-3.
    assert jnp.allclose(out, ref, atol=5e-3, rtol=5e-3), (out, ref)
    print("KERNEL_OK")
</pallas_src>

<mosaic_0001>
module attributes {stable_mosaic.version = 11 : i64} {
  func.func @cnn_kernel(%arg0: i32, %arg1: memref<1x8x32xf32, #tpu.memory_space<vmem>>, %arg2: memref<256x8xf32, #tpu.memory_space<vmem>>, %arg3: memref<3x128x64xf32, #tpu.memory_space<vmem>>, %arg4: memref<128x1xf32, #tpu.memory_space<vmem>>, %arg5: memref<4x64x128xf32, #tpu.memory_space<vmem>>, %arg6: memref<64x1xf32, #tpu.memory_space<vmem>>, %arg7: memref<8x64xf32, #tpu.memory_space<vmem>>, %arg8: memref<1x1xf32, #tpu.memory_space<vmem>>, %arg9: memref<1x1x8xf32, #tpu.memory_space<vmem>>) attributes {dimension_semantics = [#tpu.dimension_semantics<parallel>], iteration_bounds = array<i64: 1>, scalar_prefetch = 0 : i64, scratch_operands = 0 : i64, tpu.core_type = #tpu.core_type<tc>, window_params = [{transform_indices = @transform_0, window_bounds = array<i64: 1, 8, 32>}, {pipeline_mode = #tpu.pipeline_mode<synchronous>, transform_indices = @transform_1, window_bounds = array<i64: 256, 8>}, {pipeline_mode = #tpu.pipeline_mode<synchronous>, transform_indices = @transform_2, window_bounds = array<i64: 3, 128, 64>}, {pipeline_mode = #tpu.pipeline_mode<synchronous>, transform_indices = @transform_3, window_bounds = array<i64: 128, 1>}, {pipeline_mode = #tpu.pipeline_mode<synchronous>, transform_indices = @transform_4, window_bounds = array<i64: 4, 64, 128>}, {pipeline_mode = #tpu.pipeline_mode<synchronous>, transform_indices = @transform_5, window_bounds = array<i64: 64, 1>}, {pipeline_mode = #tpu.pipeline_mode<synchronous>, transform_indices = @transform_6, window_bounds = array<i64: 8, 64>}, {pipeline_mode = #tpu.pipeline_mode<synchronous>, transform_indices = @transform_7, window_bounds = array<i64: 1, 1>}, {transform_indices = @transform_8, window_bounds = array<i64: 1, 1, 8>}]} {
    %c0 = arith.constant 0 : index
    %c0_0 = arith.constant 0 : index
    %0 = vector.load %arg2[%c0, %c0_0] : memref<256x8xf32, #tpu.memory_space<vmem>>, vector<256x8xf32>
    %c0_1 = arith.constant 0 : index
    %c0_2 = arith.constant 0 : index
    %c0_3 = arith.constant 0 : index
    %1 = vector.load %arg1[%c0_1, %c0_2, %c0_3] : memref<1x8x32xf32, #tpu.memory_space<vmem>>, vector<1x8x32xf32>
    %2 = vector.shape_cast %1 : vector<1x8x32xf32> to vector<8x32xf32>
    %cst = arith.constant dense<0.000000e+00> : vector<256x32xf32>
    %3 = tpu.matmul %0, %2, %cst {dimension_numbers = #tpu.dot_dimension_numbers<[1], [0], [0], [1], [0, 0, 1, 1], [], []>} : vector<256x8xf32>, vector<8x32xf32>, vector<256x32xf32> -> vector<256x32xf32>
    %4 = vector.extract_strided_slice %3 {offsets = [0, 0], sizes = [64, 32], strides = [1, 1]} : vector<256x32xf32> to vector<64x32xf32>
    %5 = vector.extract_strided_slice %3 {offsets = [64, 0], sizes = [64, 32], strides = [1, 1]} : vector<256x32xf32> to vector<64x32xf32>
    %6 = arith.maximumf %4, %5 : vector<64x32xf32>
    %cst_4 = arith.constant 0.000000e+00 : f32
    %7 = vector.broadcast %cst_4 : f32 to vector<64x32xf32>
    %8 = arith.maximumf %6, %7 : vector<64x32xf32>
    %9 = vector.extract_strided_slice %3 {offsets = [128, 0], sizes = [64, 32], strides = [1, 1]} : vector<256x32xf32> to vector<64x32xf32>
    %10 = vector.extract_strided_slice %3 {offsets = [192, 0], sizes = [64, 32], strides = [1, 1]} : vector<256x32xf32> to vector<64x32xf32>
    %11 = arith.maximumf %9, %10 : vector<64x32xf32>
    %cst_5 = arith.constant 0.000000e+00 : f32
    %12 = vector.broadcast %cst_5 : f32 to vector<64x32xf32>
    %13 = arith.maximumf %11, %12 : vector<64x32xf32>
    %c1 = arith.constant 1 : index
    %c0_6 = arith.constant 0 : index
    %c0_7 = arith.constant 0 : index
    %14 = vector.load %arg3[%c1, %c0_6, %c0_7] : memref<3x128x64xf32, #tpu.memory_space<vmem>>, vector<1x128x64xf32>
    %15 = vector.shape_cast %14 : vector<1x128x64xf32> to vector<128x64xf32>
    %cst_8 = arith.constant dense<0.000000e+00> : vector<128x32xf32>
    %16 = tpu.matmul %15, %8, %cst_8 {dimension_numbers = #tpu.dot_dimension_numbers<[1], [0], [0], [1], [0, 0, 1, 1], [], []>} : vector<128x64xf32>, vector<64x32xf32>, vector<128x32xf32> -> vector<128x32xf32>
    %c2 = arith.constant 2 : index
    %c0_9 = arith.constant 0 : index
    %c0_10 = arith.constant 0 : index
    %17 = vector.load %arg3[%c2, %c0_9, %c0_10] : memref<3x128x64xf32, #tpu.memory_space<vmem>>, vector<1x128x64xf32>
    %18 = vector.shape_cast %17 : vector<1x128x64xf32> to vector<128x64xf32>
    %cst_11 = arith.constant dense<0.000000e+00> : vector<128x32xf32>
    %19 = tpu.matmul %18, %13, %cst_11 {dimension_numbers = #tpu.dot_dimension_numbers<[1], [0], [0], [1], [0, 0, 1, 1], [], []>} : vector<128x64xf32>, vector<64x32xf32>, vector<128x32xf32> -> vector<128x32xf32>
    %20 = arith.addf %16, %19 : vector<128x32xf32>
    %c0_12 = arith.constant 0 : index
    %c0_13 = arith.constant 0 : index
    %c0_14 = arith.constant 0 : index
    %21 = vector.load %arg3[%c0_12, %c0_13, %c0_14] : memref<3x128x64xf32, #tpu.memory_space<vmem>>, vector<1x128x64xf32>
    %22 = vector.shape_cast %21 : vector<1x128x64xf32> to vector<128x64xf32>
    %cst_15 = arith.constant dense<0.000000e+00> : vector<128x32xf32>
    %23 = tpu.matmul %22, %8, %cst_15 {dimension_numbers = #tpu.dot_dimension_numbers<[1], [0], [0], [1], [0, 0, 1, 1], [], []>} : vector<128x64xf32>, vector<64x32xf32>, vector<128x32xf32> -> vector<128x32xf32>
    %c1_16 = arith.constant 1 : index
    %c0_17 = arith.constant 0 : index
    %c0_18 = arith.constant 0 : index
    %24 = vector.load %arg3[%c1_16, %c0_17, %c0_18] : memref<3x128x64xf32, #tpu.memory_space<vmem>>, vector<1x128x64xf32>
    %25 = vector.shape_cast %24 : vector<1x128x64xf32> to vector<128x64xf32>
    %cst_19 = arith.constant dense<0.000000e+00> : vector<128x32xf32>
    %26 = tpu.matmul %25, %13, %cst_19 {dimension_numbers = #tpu.dot_dimension_numbers<[1], [0], [0], [1], [0, 0, 1, 1], [], []>} : vector<128x64xf32>, vector<64x32xf32>, vector<128x32xf32> -> vector<128x32xf32>
    %27 = arith.addf %23, %26 : vector<128x32xf32>
    %cst_20 = arith.constant 0.000000e+00 : f32
    %28 = vector.broadcast %cst_20 : f32 to vector<64x8xf32>
    %29 = vector.extract_strided_slice %13 {offsets = [0, 0], sizes = [64, 24], strides = [1, 1]} : vector<64x32xf32> to vector<64x24xf32>
    %30 = tpu.concatenate %28, %29 in 1 : vector<64x8xf32>, vector<64x24xf32> -> vector<64x32xf32>
    %31 = vector.extract_strided_slice %8 {offsets = [0, 8], sizes = [64, 24], strides = [1, 1]} : vector<64x32xf32> to vector<64x24xf32>
    %32 = tpu.concatenate %31, %28 in 1 : vector<64x24xf32>, vector<64x8xf32> -> vector<64x32xf32>
    %c0_21 = arith.constant 0 : index
    %c0_22 = arith.constant 0 : index
    %c0_23 = arith.constant 0 : index
    %33 = vector.load %arg3[%c0_21, %c0_22, %c0_23] : memref<3x128x64xf32, #tpu.memory_space<vmem>>, vector<1x128x64xf32>
    %34 = vector.shape_cast %33 : vector<1x128x64xf32> to vector<128x64xf32>
    %cst_24 = arith.constant dense<0.000000e+00> : vector<128x32xf32>
    %35 = tpu.matmul %34, %30, %cst_24 {dimension_numbers = #tpu.dot_dimension_numbers<[1], [0], [0], [1], [0, 0, 1, 1], [], []>} : vector<128x64xf32>, vector<64x32xf32>, vector<128x32xf32> -> vector<128x32xf32>
    %36 = arith.addf %20, %35 : vector<128x32xf32>
    %c2_25 = arith.constant 2 : index
    %c0_26 = arith.constant 0 : index
    %c0_27 = arith.constant 0 : index
    %37 = vector.load %arg3[%c2_25, %c0_26, %c0_27] : memref<3x128x64xf32, #tpu.memory_space<vmem>>, vector<1x128x64xf32>
    %38 = vector.shape_cast %37 : vector<1x128x64xf32> to vector<128x64xf32>
    %cst_28 = arith.constant dense<0.000000e+00> : vector<128x32xf32>
    %39 = tpu.matmul %38, %32, %cst_28 {dimension_numbers = #tpu.dot_dimension_numbers<[1], [0], [0], [1], [0, 0, 1, 1], [], []>} : vector<128x64xf32>, vector<64x32xf32>, vector<128x32xf32> -> vector<128x32xf32>
    %40 = arith.addf %27, %39 : vector<128x32xf32>
    %41 = arith.maximumf %36, %40 : vector<128x32xf32>
    %c0_29 = arith.constant 0 : index
    %c0_30 = arith.constant 0 : index
    %42 = vector.load %arg4[%c0_29, %c0_30] : memref<128x1xf32, #tpu.memory_space<vmem>>, vector<128x1xf32>
    %43 = vector.broadcast %42 : vector<128x1xf32> to vector<128x32xf32>
    %44 = arith.addf %41, %43 : vector<128x32xf32>
    %cst_31 = arith.constant 0.000000e+00 : f32
    %45 = vector.broadcast %cst_31 : f32 to vector<128x32xf32>
    %46 = arith.maximumf %44, %45 : vector<128x32xf32>
    %c0_32 = arith.constant 0 : index
    %c0_33 = arith.constant 0 : index
    %c0_34 = arith.constant 0 : index
    %47 = vector.load %arg5[%c0_32, %c0_33, %c0_34] : memref<4x64x128xf32, #tpu.memory_space<vmem>>, vector<1x64x128xf32>
    %48 = vector.shape_cast %47 : vector<1x64x128xf32> to vector<64x128xf32>
    %49 = vector.extract_strided_slice %46 {offsets = [0, 0], sizes = [128, 8], strides = [1, 1]} : vector<128x32xf32> to vector<128x8xf32>
    %cst_35 = arith.constant dense<0.000000e+00> : vector<64x8xf32>
    %50 = tpu.matmul %48, %49, %cst_35 {dimension_numbers = #tpu.dot_dimension_numbers<[1], [0], [0], [1], [0, 0, 1, 1], [], []>} : vector<64x128xf32>, vector<128x8xf32>, vector<64x8xf32> -> vector<64x8xf32>
    %c1_36 = arith.constant 1 : index
    %c0_37 = arith.constant 0 : index
    %c0_38 = arith.constant 0 : index
    %51 = vector.load %arg5[%c1_36, %c0_37, %c0_38] : memref<4x64x128xf32, #tpu.memory_space<vmem>>, vector<1x64x128xf32>
    %52 = vector.shape_cast %51 : vector<1x64x128xf32> to vector<64x128xf32>
    %53 = vector.extract_strided_slice %46 {offsets = [0, 8], sizes = [128, 8], strides = [1, 1]} : vector<128x32xf32> to vector<128x8xf32>
    %cst_39 = arith.constant dense<0.000000e+00> : vector<64x8xf32>
    %54 = tpu.matmul %52, %53, %cst_39 {dimension_numbers = #tpu.dot_dimension_numbers<[1], [0], [0], [1], [0, 0, 1, 1], [], []>} : vector<64x128xf32>, vector<128x8xf32>, vector<64x8xf32> -> vector<64x8xf32>
    %55 = arith.addf %50, %54 : vector<64x8xf32>
    %c2_40 = arith.constant 2 : index
    %c0_41 = arith.constant 0 : index
    %c0_42 = arith.constant 0 : index
    %56 = vector.load %arg5[%c2_40, %c0_41, %c0_42] : memref<4x64x128xf32, #tpu.memory_space<vmem>>, vector<1x64x128xf32>
    %57 = vector.shape_cast %56 : vector<1x64x128xf32> to vector<64x128xf32>
    %58 = vector.extract_strided_slice %46 {offsets = [0, 16], sizes = [128, 8], strides = [1, 1]} : vector<128x32xf32> to vector<128x8xf32>
    %cst_43 = arith.constant dense<0.000000e+00> : vector<64x8xf32>
    %59 = tpu.matmul %57, %58, %cst_43 {dimension_numbers = #tpu.dot_dimension_numbers<[1], [0], [0], [1], [0, 0, 1, 1], [], []>} : vector<64x128xf32>, vector<128x8xf32>, vector<64x8xf32> -> vector<64x8xf32>
    %60 = arith.addf %55, %59 : vector<64x8xf32>
    %c3 = arith.constant 3 : index
    %c0_44 = arith.constant 0 : index
    %c0_45 = arith.constant 0 : index
    %61 = vector.load %arg5[%c3, %c0_44, %c0_45] : memref<4x64x128xf32, #tpu.memory_space<vmem>>, vector<1x64x128xf32>
    %62 = vector.shape_cast %61 : vector<1x64x128xf32> to vector<64x128xf32>
    %63 = vector.extract_strided_slice %46 {offsets = [0, 24], sizes = [128, 8], strides = [1, 1]} : vector<128x32xf32> to vector<128x8xf32>
    %cst_46 = arith.constant dense<0.000000e+00> : vector<64x8xf32>
    %64 = tpu.matmul %62, %63, %cst_46 {dimension_numbers = #tpu.dot_dimension_numbers<[1], [0], [0], [1], [0, 0, 1, 1], [], []>} : vector<64x128xf32>, vector<128x8xf32>, vector<64x8xf32> -> vector<64x8xf32>
    %65 = arith.addf %60, %64 : vector<64x8xf32>
    %c0_47 = arith.constant 0 : index
    %c0_48 = arith.constant 0 : index
    %66 = vector.load %arg6[%c0_47, %c0_48] : memref<64x1xf32, #tpu.memory_space<vmem>>, vector<64x1xf32>
    %67 = vector.broadcast %66 : vector<64x1xf32> to vector<64x8xf32>
    %68 = arith.addf %65, %67 : vector<64x8xf32>
    %cst_49 = arith.constant 0.000000e+00 : f32
    %69 = vector.broadcast %cst_49 : f32 to vector<64x8xf32>
    %70 = arith.maximumf %68, %69 : vector<64x8xf32>
    %c0_50 = arith.constant 0 : index
    %c0_51 = arith.constant 0 : index
    %71 = vector.load %arg7[%c0_50, %c0_51] : memref<8x64xf32, #tpu.memory_space<vmem>>, vector<8x64xf32>
    %cst_52 = arith.constant dense<0.000000e+00> : vector<8x8xf32>
    %72 = tpu.matmul %71, %70, %cst_52 {dimension_numbers = #tpu.dot_dimension_numbers<[1], [0], [0], [1], [0, 0, 1, 1], [], []>} : vector<8x64xf32>, vector<64x8xf32>, vector<8x8xf32> -> vector<8x8xf32>
    %c0_53 = arith.constant 0 : index
    %c0_54 = arith.constant 0 : index
    %73 = vector.load %arg8[%c0_53, %c0_54] : memref<1x1xf32, #tpu.memory_space<vmem>>, vector<1x1xf32>
    %74 = vector.broadcast %73 : vector<1x1xf32> to vector<8x8xf32>
    %75 = arith.addf %72, %74 : vector<8x8xf32>
    %76 = vector.extract_strided_slice %75 {offsets = [0, 0], sizes = [1, 8], strides = [1, 1]} : vector<8x8xf32> to vector<1x8xf32>
    %cst_55 = arith.constant 0.000000e+00 : f32
    %77 = vector.broadcast %cst_55 : f32 to vector<1x8xf32>
    %78 = arith.subf %77, %76 : vector<1x8xf32>
    %79 = math.exp %78 : vector<1x8xf32>
    %cst_56 = arith.constant 1.000000e+00 : f32
    %80 = vector.broadcast %cst_56 : f32 to vector<1x8xf32>
    %81 = arith.addf %80, %79 : vector<1x8xf32>
    %cst_57 = arith.constant 1.000000e+00 : f32
    %82 = vector.broadcast %cst_57 : f32 to vector<1x8xf32>
    %83 = arith.divf %82, %81 : vector<1x8xf32>
    %c0_58 = arith.constant 0 : index
    %c0_59 = arith.constant 0 : index
    %c0_60 = arith.constant 0 : index
    %84 = vector.load %arg9[%c0_58, %c0_59, %c0_60] : memref<1x1x8xf32, #tpu.memory_space<vmem>>, vector<1x1x8xf32>
    %85 = vector.shape_cast %84 : vector<1x1x8xf32> to vector<1x8xf32>
    %86 = vector.shape_cast %83 : vector<1x8xf32> to vector<1x1x8xf32>
    tpu.vector_store %arg9[%c0_58, %c0_59, %c0_60], %86 {strides = array<i32>} : memref<1x1x8xf32, #tpu.memory_space<vmem>>, vector<1x1x8xf32>,
    return
  }
  func.func @transform_0(%arg0: i32) -> (i32, i32, i32) {
    %c0_i32 = arith.constant 0 : i32
    %c0_i32_0 = arith.constant 0 : i32
    %c0_i32_1 = arith.constant 0 : i32
    return %arg0, %c0_i32, %c0_i32_0 : i32, i32, i32
  }
  func.func @transform_1(%arg0: i32) -> (i32, i32) {
    %c0_i32 = arith.constant 0 : i32
    %c0_i32_0 = arith.constant 0 : i32
    %c0_i32_1 = arith.constant 0 : i32
    return %c0_i32, %c0_i32_0 : i32, i32
  }
  func.func @transform_2(%arg0: i32) -> (i32, i32, i32) {
    %c0_i32 = arith.constant 0 : i32
    %c0_i32_0 = arith.constant 0 : i32
    %c0_i32_1 = arith.constant 0 : i32
    %c0_i32_2 = arith.constant 0 : i32
    return %c0_i32, %c0_i32_0, %c0_i32_1 : i32, i32, i32
  }
  func.func @transform_3(%arg0: i32) -> (i32, i32) {
    %c0_i32 = arith.constant 0 : i32
    %c0_i32_0 = arith.constant 0 : i32
    %c0_i32_1 = arith.constant 0 : i32
    return %c0_i32, %c0_i32_0 : i32, i32
  }
  func.func @transform_4(%arg0: i32) -> (i32, i32, i32) {
    %c0_i32 = arith.constant 0 : i32
    %c0_i32_0 = arith.constant 0 : i32
    %c0_i32_1 = arith.constant 0 : i32
    %c0_i32_2 = arith.constant 0 : i32
    return %c0_i32, %c0_i32_0, %c0_i32_1 : i32, i32, i32
  }
  func.func @transform_5(%arg0: i32) -> (i32, i32) {
    %c0_i32 = arith.constant 0 : i32
    %c0_i32_0 = arith.constant 0 : i32
    %c0_i32_1 = arith.constant 0 : i32
    return %c0_i32, %c0_i32_0 : i32, i32
  }
  func.func @transform_6(%arg0: i32) -> (i32, i32) {
    %c0_i32 = arith.constant 0 : i32
    %c0_i32_0 = arith.constant 0 : i32
    %c0_i32_1 = arith.constant 0 : i32
    return %c0_i32, %c0_i32_0 : i32, i32
  }
  func.func @transform_7(%arg0: i32) -> (i32, i32) {
    %c0_i32 = arith.constant 0 : i32
    %c0_i32_0 = arith.constant 0 : i32
    %c0_i32_1 = arith.constant 0 : i32
    return %c0_i32, %c0_i32_0 : i32, i32
  }
  func.func @transform_8(%arg0: i32) -> (i32, i32, i32) {
    %c0_i32 = arith.constant 0 : i32
    %c0_i32_0 = arith.constant 0 : i32
    %c0_i32_1 = arith.constant 0 : i32
    return %arg0, %c0_i32, %c0_i32_0 : i32, i32, i32
  }
}

</mosaic_0001>

<llo_original>
// kernel: tpu_custom_call.1
$region0: #{tpu_custom_call.1}
  #allocation0 [shape = 'u32[]', space=smem, size = 0x4, offset = 0x4, fixed_abs, tag = 'smem constant byte address 0x4 - core index']
  #allocation1 [shape = 'u32[72,128]{1,0:T(1,128)}', space=vmem, size = 0x9000, scoped, tag = 'internal scratch']
  #allocation2 [shape = 'f32[1,1]{1,0:T(1,128)S(1)}', space=vmem, size = 0x200, scoped, tag = 'scoped memory for tpu_custom_call.1']
  %s0 = inlined_call_operand.vmem [shape: f32[1,8,32], index: 0, kind: input, shape index: {}]
  %s1 = inlined_call_operand.vmem [shape: f32[256,8], index: 1, kind: input, shape index: {}]
  %s2 = inlined_call_operand.vmem [shape: f32[3,128,64], index: 2, kind: input, shape index: {}]
  %s3 = inlined_call_operand.vmem [shape: f32[128,1], index: 3, kind: input, shape index: {}]
  %s4 = inlined_call_operand.vmem [shape: f32[4,64,128], index: 4, kind: input, shape index: {}]
  %s5 = inlined_call_operand.vmem [shape: f32[64,1], index: 5, kind: input, shape index: {}]
  %s6 = inlined_call_operand.vmem [shape: f32[8,64], index: 6, kind: input, shape index: {}]
  %s7 = inlined_call_operand.<no memory space> [shape: f32[1,1], index: 7, kind: input, shape index: {}]
  %s8 = inlined_call_operand.hbm [shape: f32[1,1,8], index: 8, kind: output, shape index: {}]
  %s9 = sld [smem:[#allocation0]]
  $region42: #{tpu_custom_call.1} parent=0
    _
  %s11 = ssub.s32 1, %s9
  %s12 = scalar_select 0, %s11, %s9
  %v13 = vstv %s7
  %14 = vst [vmem:[#allocation2] sm:$0x1] %v13
  $region1: #{tpu_custom_call.1} parent=0
    #allocation3 [shape = 'u8[512]{0}', space=vmem, size = 0x400, scoped, tag = 'output window, operand 0, single buffered']
    #allocation4 [shape = 's32[1]{0}', space=sflag, size = 0x4, scoped, tag = 'scoped memory for tpu_custom_call.1']
    %15 = vsyncpa [#allocation4], 0
    // Predicated region
    $region2: #{tpu_custom_call.1} parent=1 // pred_check
      _
    $region3: #{tpu_custom_call.1} parent=1 // pred_check_branch
      %17 = sbr.rel (0) target = $region5
    $region4: #{tpu_custom_call.1} parent=1 // pred_region
      _
    $region5: #{tpu_custom_call.1} parent=1 // pred_fallthru
      _
    // Predicated region
    $region6: #{tpu_custom_call.1} parent=1 // pred_check
      _
    $region7: #{tpu_custom_call.1} parent=1 // pred_check_branch
      %19 = sbr.rel (0) target = $region9
    $region8: #{tpu_custom_call.1} parent=1 // pred_region
      _
    $region9: #{tpu_custom_call.1} parent=1 // pred_fallthru
      _
    // Predicated region
    $region10: #{tpu_custom_call.1} parent=1 // pred_check
      _
    $region11: #{tpu_custom_call.1} parent=1 // pred_check_branch
      %21 = sbr.rel (0) target = $region13
    $region12: #{tpu_custom_call.1} parent=1 // pred_region
      _
    $region13: #{tpu_custom_call.1} parent=1 // pred_fallthru
      _
    // Predicated region
    $region14: #{tpu_custom_call.1} parent=1 // pred_check
      _
    $region15: #{tpu_custom_call.1} parent=1 // pred_check_branch
      %23 = sbr.rel (0) target = $region17
    $region16: #{tpu_custom_call.1} parent=1 // pred_region
      _
    $region17: #{tpu_custom_call.1} parent=1 // pred_fallthru
      _
    // Predicated region
    $region18: #{tpu_custom_call.1} parent=1 // pred_check
      _
    $region19: #{tpu_custom_call.1} parent=1 // pred_check_branch
      %25 = sbr.rel (0) target = $region21
    $region20: #{tpu_custom_call.1} parent=1 // pred_region
      _
    $region21: #{tpu_custom_call.1} parent=1 // pred_fallthru
      _
    // Predicated region
    $region22: #{tpu_custom_call.1} parent=1 // pred_check
      _
    $region23: #{tpu_custom_call.1} parent=1 // pred_check_branch
      %27 = sbr.rel (0) target = $region25
    $region24: #{tpu_custom_call.1} parent=1 // pred_region
      _
    $region25: #{tpu_custom_call.1} parent=1 // pred_fallthru
      _
    // Predicated region
    $region26: #{tpu_custom_call.1} parent=1 // pred_check
      _
    $region27: #{tpu_custom_call.1} parent=1 // pred_check_branch
      %29 = sbr.rel (0) target = $region29
    $region28: #{tpu_custom_call.1} parent=1 // pred_region
      _
    $region29: #{tpu_custom_call.1} parent=1 // pred_fallthru
      _
    // Predicated region
    $region30: #{tpu_custom_call.1} parent=1 // pred_check
      _
    $region31: #{tpu_custom_call.1} parent=1 // pred_check_branch
      %31 = sbr.rel (0) target = $region33
    $region32: #{tpu_custom_call.1} parent=1 // pred_region
      _
    $region33: #{tpu_custom_call.1} parent=1 // pred_fallthru
      _
    %v32 = vld [vmem:[%s1] sm:$0xff]
    %v33 = vld [vmem:[%s1 + $0x8] sm:$0xff]
    %v34 = vld [vmem:[%s1 + $0x10] sm:$0xff]
    %v35 = vld [vmem:[%s1 + $0x18] sm:$0xff]
    %v36 = vld [vmem:[%s1 + $0x20] sm:$0xff]
    %v37 = vld [vmem:[%s1 + $0x28] sm:$0xff]
    %v38 = vld [vmem:[%s1 + $0x30] sm:$0xff]
    %v39 = vld [vmem:[%s1 + $0x38] sm:$0xff]
    %v40 = vld [vmem:[%s1 + $0x40] sm:$0xff]
    %v41 = vld [vmem:[%s1 + $0x48] sm:$0xff]
    %v42 = vld [vmem:[%s1 + $0x50] sm:$0xff]
    %v43 = vld [vmem:[%s1 + $0x58] sm:$0xff]
    %v44 = vld [vmem:[%s1 + $0x60] sm:$0xff]
    %v45 = vld [vmem:[%s1 + $0x68] sm:$0xff]
    %v46 = vld [vmem:[%s1 + $0x70] sm:$0xff]
    %v47 = vld [vmem:[%s1 + $0x78] sm:$0xff]
    %v48 = vld [vmem:[%s1 + $0x80] sm:$0xff]
    %v49 = vld [vmem:[%s1 + $0x88] sm:$0xff]
    %v50 = vld [vmem:[%s1 + $0x90] sm:$0xff]
    %v51 = vld [vmem:[%s1 + $0x98] sm:$0xff]
    %v52 = vld [vmem:[%s1 + $0xa0] sm:$0xff]
    %v53 = vld [vmem:[%s1 + $0xa8] sm:$0xff]
    %v54 = vld [vmem:[%s1 + $0xb0] sm:$0xff]
    %v55 = vld [vmem:[%s1 + $0xb8] sm:$0xff]
    %v56 = vld [vmem:[%s1 + $0xc0] sm:$0xff]
    %v57 = vld [vmem:[%s1 + $0xc8] sm:$0xff]
    %v58 = vld [vmem:[%s1 + $0xd0] sm:$0xff]
    %v59 = vld [vmem:[%s1 + $0xd8] sm:$0xff]
    %v60 = vld [vmem:[%s1 + $0xe0] sm:$0xff]
    %v61 = vld [vmem:[%s1 + $0xe8] sm:$0xff]
    %v62 = vld [vmem:[%s1 + $0xf0] sm:$0xff]
    %v63 = vld [vmem:[%s1 + $0xf8] sm:$0xff]
    %v64 = vld [vmem:[%s0] sm:$0xff]
    %vm65 = vcmask 64512
    %v67 = vsel %vm65, %v32, 0
    %v70 = vsel %vm65, %v33, 0
    %v73 = vsel %vm65, %v34, 0
    %v76 = vsel %vm65, %v35, 0
    %v79 = vsel %vm65, %v36, 0
    %v82 = vsel %vm65, %v37, 0
    %v85 = vsel %vm65, %v38, 0
    %v88 = vsel %vm65, %v39, 0
    %v91 = vsel %vm65, %v40, 0
    %v94 = vsel %vm65, %v41, 0
    %v97 = vsel %vm65, %v42, 0
    %v100 = vsel %vm65, %v43, 0
    %v103 = vsel %vm65, %v44, 0
    %v106 = vsel %vm65, %v45, 0
    %v109 = vsel %vm65, %v46, 0
    %v112 = vsel %vm65, %v47, 0
    %v115 = vsel %vm65, %v48, 0
    %v118 = vsel %vm65, %v49, 0
    %v121 = vsel %vm65, %v50, 0
    %v124 = vsel %vm65, %v51, 0
    %v127 = vsel %vm65, %v52, 0
    %v130 = vsel %vm65, %v53, 0
    %v133 = vsel %vm65, %v54, 0
    %v136 = vsel %vm65, %v55, 0
    %v139 = vsel %vm65, %v56, 0
    %v142 = vsel %vm65, %v57, 0
    %v145 = vsel %vm65, %v58, 0
    %v148 = vsel %vm65, %v59, 0
    %v151 = vsel %vm65, %v60, 0
    %v154 = vsel %vm65, %v61, 0
    %v157 = vsel %vm65, %v62, 0
    %v160 = vsel %vm65, %v63, 0
    %162 = vmatpush.msra.mxu0 0.0
    %163 = vmatpush.msra.mxu0 0.0
    %164 = vmatpush.msra.mxu0 0.0
    %165 = vmatpush.msra.mxu0 0.0
    %166 = vmatpush.msra.mxu0 0.0
    %167 = vmatpush.msra.mxu0 0.0
    %168 = vmatpush.msra.mxu0 0.0
    %169 = vmatpush.msra.mxu0 0.0
    %170 = vmatpush.msra.mxu0 0.0
    %171 = vmatpush.msra.mxu0 0.0
    %172 = vmatpush.msra.mxu0 0.0
    %173 = vmatpush.msra.mxu0 0.0
    %174 = vmatpush.msra.mxu0 0.0
    %175 = vmatpush.msra.mxu0 0.0
    %176 = vmatpush.msra.mxu0 0.0
    %177 = vmatpush.msra.mxu0 %v64
    %178 = vmatmul.f32.gmra.mxu0 %v67
    %v179 = vpop.f32.mrf.mxu0
    %v180 = vadd.f32 0.0, %v179
    %181 = vmatmul.f32.gmra.mxu0 %v70
    %v182 = vpop.f32.mrf.mxu0
    %v183 = vadd.f32 0.0, %v182
    %184 = vmatmul.f32.gmra.mxu0 %v73
    %v185 = vpop.f32.mrf.mxu0
    %v186 = vadd.f32 0.0, %v185
    %187 = vmatmul.f32.gmra.mxu0 %v76
    %v188 = vpop.f32.mrf.mxu0
    %v189 = vadd.f32 0.0, %v188
    %190 = vmatmul.f32.gmra.mxu0 %v79
    %v191 = vpop.f32.mrf.mxu0
    %v192 = vadd.f32 0.0, %v191
    %193 = vmatmul.f32.gmra.mxu0 %v82
    %v194 = vpop.f32.mrf.mxu0
    %v195 = vadd.f32 0.0, %v194
    %196 = vmatmul.f32.gmra.mxu0 %v85
    %v197 = vpop.f32.mrf.mxu0
    %v198 = vadd.f32 0.0, %v197
    %199 = vmatmul.f32.gmra.mxu0 %v88
    %v200 = vpop.f32.mrf.mxu0
    %v201 = vadd.f32 0.0, %v200
    %202 = vmatmul.f32.gmra.mxu0 %v91
    %v203 = vpop.f32.mrf.mxu0
    %v204 = vadd.f32 0.0, %v203
    %205 = vmatmul.f32.gmra.mxu0 %v94
    %v206 = vpop.f32.mrf.mxu0
    %v207 = vadd.f32 0.0, %v206
    %208 = vmatmul.f32.gmra.mxu0 %v97
    %v209 = vpop.f32.mrf.mxu0
    %v210 = vadd.f32 0.0, %v209
    %211 = vmatmul.f32.gmra.mxu0 %v100
    %v212 = vpop.f32.mrf.mxu0
    %v213 = vadd.f32 0.0, %v212
    %214 = vmatmul.f32.gmra.mxu0 %v103
    %v215 = vpop.f32.mrf.mxu0
    %v216 = vadd.f32 0.0, %v215
    %217 = vmatmul.f32.gmra.mxu0 %v106
    %v218 = vpop.f32.mrf.mxu0
    %v219 = vadd.f32 0.0, %v218
    %220 = vmatmul.f32.gmra.mxu0 %v109
    %v221 = vpop.f32.mrf.mxu0
    %v222 = vadd.f32 0.0, %v221
    %223 = vmatmul.f32.gmra.mxu0 %v112
    %v224 = vpop.f32.mrf.mxu0
    %v225 = vadd.f32 0.0, %v224
    %226 = vmatmul.f32.gmra.mxu0 %v115
    %v227 = vpop.f32.mrf.mxu0
    %v228 = vadd.f32 0.0, %v227
    %229 = vmatmul.f32.gmra.mxu0 %v118
    %v230 = vpop.f32.mrf.mxu0
    %v231 = vadd.f32 0.0, %v230
    %232 = vmatmul.f32.gmra.mxu0 %v121
    %v233 = vpop.f32.mrf.mxu0
    %v234 = vadd.f32 0.0, %v233
    %235 = vmatmul.f32.gmra.mxu0 %v124
    %v236 = vpop.f32.mrf.mxu0
    %v237 = vadd.f32 0.0, %v236
    %238 = vmatmul.f32.gmra.mxu0 %v127
    %v239 = vpop.f32.mrf.mxu0
    %v240 = vadd.f32 0.0, %v239
    %241 = vmatmul.f32.gmra.mxu0 %v130
    %v242 = vpop.f32.mrf.mxu0
    %v243 = vadd.f32 0.0, %v242
    %244 = vmatmul.f32.gmra.mxu0 %v133
    %v245 = vpop.f32.mrf.mxu0
    %v246 = vadd.f32 0.0, %v245
    %247 = vmatmul.f32.gmra.mxu0 %v136
    %v248 = vpop.f32.mrf.mxu0
    %v249 = vadd.f32 0.0, %v248
    %250 = vmatmul.f32.gmra.mxu0 %v139
    %v251 = vpop.f32.mrf.mxu0
    %v252 = vadd.f32 0.0, %v251
    %253 = vmatmul.f32.gmra.mxu0 %v142
    %v254 = vpop.f32.mrf.mxu0
    %v255 = vadd.f32 0.0, %v254
    %256 = vmatmul.f32.gmra.mxu0 %v145
    %v257 = vpop.f32.mrf.mxu0
    %v258 = vadd.f32 0.0, %v257
    %259 = vmatmul.f32.gmra.mxu0 %v148
    %v260 = vpop.f32.mrf.mxu0
    %v261 = vadd.f32 0.0, %v260
    %262 = vmatmul.f32.gmra.mxu0 %v151
    %v263 = vpop.f32.mrf.mxu0
    %v264 = vadd.f32 0.0, %v263
    %265 = vmatmul.f32.gmra.mxu0 %v154
    %v266 = vpop.f32.mrf.mxu0
    %v267 = vadd.f32 0.0, %v266
    %268 = vmatmul.f32.gmra.mxu0 %v157
    %v269 = vpop.f32.mrf.mxu0
    %v270 = vadd.f32 0.0, %v269
    %271 = vmatmul.f32.gmra.mxu0 %v160
    %v272 = vpop.f32.mrf.mxu0
    %v273 = vadd.f32 0.0, %v272
    %274 = vdwg.mxu0
    %v275 = vmax.f32 %v180, %v204
    %v276 = vmax.f32 %v183, %v207
    %v277 = vmax.f32 %v186, %v210
    %v278 = vmax.f32 %v189, %v213
    %v279 = vmax.f32 %v192, %v216
    %v280 = vmax.f32 %v195, %v219
    %v281 = vmax.f32 %v198, %v222
    %v282 = vmax.f32 %v201, %v225
    %v283 = vmax.f32 %v275, 0.0
    %v284 = vmax.f32 %v276, 0.0
    %v285 = vmax.f32 %v277, 0.0
    %v286 = vmax.f32 %v278, 0.0
    %v287 = vmax.f32 %v279, 0.0
    %v288 = vmax.f32 %v280, 0.0
    %v289 = vmax.f32 %v281, 0.0
    %v290 = vmax.f32 %v282, 0.0
    %v291 = vmax.f32 %v228, %v252
    %v292 = vmax.f32 %v231, %v255
    %v293 = vmax.f32 %v234, %v258
    %v294 = vmax.f32 %v237, %v261
    %v295 = vmax.f32 %v240, %v264
    %v296 = vmax.f32 %v243, %v267
    %v297 = vmax.f32 %v246, %v270
    %v298 = vmax.f32 %v249, %v273
    %v299 = vmax.f32 %v291, 0.0
    %v300 = vmax.f32 %v292, 0.0
    %v301 = vmax.f32 %v293, 0.0
    %v302 = vmax.f32 %v294, 0.0
    %v303 = vmax.f32 %v295, 0.0
    %v304 = vmax.f32 %v296, 0.0
    %v305 = vmax.f32 %v297, 0.0
    %v306 = vmax.f32 %v298, 0.0
    %s307 = scalar_lea.vmem %s2, 128
    %v308 = vld [vmem:[%s307] sm:$0xff]
    %v309 = vld [vmem:[%s307 + $0x8] sm:$0xff]
    %v310 = vld [vmem:[%s307 + $0x10] sm:$0xff]
    %v311 = vld [vmem:[%s307 + $0x18] sm:$0xff]
    %v312 = vld [vmem:[%s307 + $0x20] sm:$0xff]
    %v313 = vld [vmem:[%s307 + $0x28] sm:$0xff]
    %v314 = vld [vmem:[%s307 + $0x30] sm:$0xff]
    %v315 = vld [vmem:[%s307 + $0x38] sm:$0xff]
    %v316 = vld [vmem:[%s307 + $0x40] sm:$0xff]
    %v317 = vld [vmem:[%s307 + $0x48] sm:$0xff]
    %v318 = vld [vmem:[%s307 + $0x50] sm:$0xff]
    %v319 = vld [vmem:[%s307 + $0x58] sm:$0xff]
    %v320 = vld [vmem:[%s307 + $0x60] sm:$0xff]
    %v321 = vld [vmem:[%s307 + $0x68] sm:$0xff]
    %v322 = vld [vmem:[%s307 + $0x70] sm:$0xff]
    %v323 = vld [vmem:[%s307 + $0x78] sm:$0xff]
    %s324 = scalar_lea.vmem %s2, 256
    %v325 = vld [vmem:[%s324] sm:$0xff]
    %v326 = vld [vmem:[%s324 + $0x8] sm:$0xff]
    %v327 = vld [vmem:[%s324 + $0x10] sm:$0xff]
    %v328 = vld [vmem:[%s324 + $0x18] sm:$0xff]
    %v329 = vld [vmem:[%s324 + $0x20] sm:$0xff]
    %v330 = vld [vmem:[%s324 + $0x28] sm:$0xff]
    %v331 = vld [vmem:[%s324 + $0x30] sm:$0xff]
    %v332 = vld [vmem:[%s324 + $0x38] sm:$0xff]
    %v333 = vld [vmem:[%s324 + $0x40] sm:$0xff]
    %v334 = vld [vmem:[%s324 + $0x48] sm:$0xff]
    %v335 = vld [vmem:[%s324 + $0x50] sm:$0xff]
    %v336 = vld [vmem:[%s324 + $0x58] sm:$0xff]
    %v337 = vld [vmem:[%s324 + $0x60] sm:$0xff]
    %v338 = vld [vmem:[%s324 + $0x68] sm:$0xff]
    %v339 = vld [vmem:[%s324 + $0x70] sm:$0xff]
    %v340 = vld [vmem:[%s324 + $0x78] sm:$0xff]
    %vm341 = vcmask 523264
    %v343 = vsel %vm341, %v325, 0
    %v346 = vsel %vm341, %v326, 0
    %v349 = vsel %vm341, %v327, 0
    %v352 = vsel %vm341, %v328, 0
    %v355 = vsel %vm341, %v329, 0
    %v358 = vsel %vm341, %v330, 0
    %v361 = vsel %vm341, %v331, 0
    %v364 = vsel %vm341, %v332, 0
    %v367 = vsel %vm341, %v333, 0
    %v370 = vsel %vm341, %v334, 0
    %v373 = vsel %vm341, %v335, 0
    %v376 = vsel %vm341, %v336, 0
    %v379 = vsel %vm341, %v337, 0
    %v382 = vsel %vm341, %v338, 0
    %v385 = vsel %vm341, %v339, 0
    %v388 = vsel %vm341, %v340, 0
    %390 = vmatpush.msra.mxu0 0.0
    %391 = vmatpush.msra.mxu0 0.0
    %392 = vmatpush.msra.mxu0 0.0
    %393 = vmatpush.msra.mxu0 0.0
    %394 = vmatpush.msra.mxu0 0.0
    %395 = vmatpush.msra.mxu0 0.0
    %396 = vmatpush.msra.mxu0 0.0
    %397 = vmatpush.msra.mxu0 0.0
    %398 = vmatpush.msra.mxu0 %v306
    %399 = vmatpush.msra.mxu0 %v305
    %400 = vmatpush.msra.mxu0 %v304
    %401 = vmatpush.msra.mxu0 %v303
    %402 = vmatpush.msra.mxu0 %v302
    %403 = vmatpush.msra.mxu0 %v301
    %404 = vmatpush.msra.mxu0 %v300
    %405 = vmatpush.msra.mxu0 %v299
    %406 = vmatmul.f32.gmra.mxu0 %v343
    %v407 = vpop.f32.mrf.mxu0
    %v408 = vadd.f32 0.0, %v407
    %409 = vmatmul.f32.gmra.mxu0 %v346
    %v410 = vpop.f32.mrf.mxu0
    %v411 = vadd.f32 0.0, %v410
    %412 = vmatmul.f32.gmra.mxu0 %v349
    %v413 = vpop.f32.mrf.mxu0
    %v414 = vadd.f32 0.0, %v413
    %415 = vmatmul.f32.gmra.mxu0 %v352
    %v416 = vpop.f32.mrf.mxu0
    %v417 = vadd.f32 0.0, %v416
    %418 = vmatmul.f32.gmra.mxu0 %v355
    %v419 = vpop.f32.mrf.mxu0
    %v420 = vadd.f32 0.0, %v419
    %421 = vmatmul.f32.gmra.mxu0 %v358
    %v422 = vpop.f32.mrf.mxu0
    %v423 = vadd.f32 0.0, %v422
    %424 = vmatmul.f32.gmra.mxu0 %v361
    %v425 = vpop.f32.mrf.mxu0
    %v426 = vadd.f32 0.0, %v425
    %427 = vmatmul.f32.gmra.mxu0 %v364
    %v428 = vpop.f32.mrf.mxu0
    %v429 = vadd.f32 0.0, %v428
    %430 = vmatmul.f32.gmra.mxu0 %v367
    %v431 = vpop.f32.mrf.mxu0
    %v432 = vadd.f32 0.0, %v431
    %433 = vmatmul.f32.gmra.mxu0 %v370
    %v434 = vpop.f32.mrf.mxu0
    %v435 = vadd.f32 0.0, %v434
    %436 = vmatmul.f32.gmra.mxu0 %v373
    %v437 = vpop.f32.mrf.mxu0
    %v438 = vadd.f32 0.0, %v437
    %439 = vmatmul.f32.gmra.mxu0 %v376
    %v440 = vpop.f32.mrf.mxu0
    %v441 = vadd.f32 0.0, %v440
    %442 = vmatmul.f32.gmra.mxu0 %v379
    %v443 = vpop.f32.mrf.mxu0
    %v444 = vadd.f32 0.0, %v443
    %445 = vmatmul.f32.gmra.mxu0 %v382
    %v446 = vpop.f32.mrf.mxu0
    %v447 = vadd.f32 0.0, %v446
    %448 = vmatmul.f32.gmra.mxu0 %v385
    %v449 = vpop.f32.mrf.mxu0
    %v450 = vadd.f32 0.0, %v449
    %451 = vmatmul.f32.gmra.mxu0 %v388
    %v452 = vpop.f32.mrf.mxu0
    %v453 = vadd.f32 0.0, %v452
    %454 = vdwg.mxu0
    %v456 = vsel %vm341, %v308, 0
    %v459 = vsel %vm341, %v309, 0
    %v462 = vsel %vm341, %v310, 0
    %v465 = vsel %vm341, %v311, 0
    %v468 = vsel %vm341, %v312, 0
    %v471 = vsel %vm341, %v313, 0
    %v474 = vsel %vm341, %v314, 0
    %v477 = vsel %vm341, %v315, 0
    %v480 = vsel %vm341, %v316, 0
    %v483 = vsel %vm341, %v317, 0
    %v486 = vsel %vm341, %v318, 0
    %v489 = vsel %vm341, %v319, 0
    %v492 = vsel %vm341, %v320, 0
    %v495 = vsel %vm341, %v321, 0
    %v498 = vsel %vm341, %v322, 0
    %v501 = vsel %vm341, %v323, 0
    %503 = vmatpush.msra.mxu0 0.0
    %504 = vmatpush.msra.mxu0 0.0
    %505 = vmatpush.msra.mxu0 0.0
    %506 = vmatpush.msra.mxu0 0.0
    %507 = vmatpush.msra.mxu0 0.0
    %508 = vmatpush.msra.mxu0 0.0
    %509 = vmatpush.msra.mxu0 0.0
    %510 = vmatpush.msra.mxu0 0.0
    %511 = vmatpush.msra.mxu0 %v290
    %512 = vmatpush.msra.mxu0 %v289
    %513 = vmatpush.msra.mxu0 %v288
    %514 = vmatpush.msra.mxu0 %v287
    %515 = vmatpush.msra.mxu0 %v286
    %516 = vmatpush.msra.mxu0 %v285
    %517 = vmatpush.msra.mxu0 %v284
    %518 = vmatpush.msra.mxu0 %v283
    %519 = vmatmul.f32.gmra.mxu0 %v456
    %v520 = vpop.f32.mrf.mxu0
    %v521 = vadd.f32 %v408, %v520
    %522 = vmatmul.f32.gmra.mxu0 %v459
    %v523 = vpop.f32.mrf.mxu0
    %v524 = vadd.f32 %v411, %v523
    %525 = vmatmul.f32.gmra.mxu0 %v462
    %v526 = vpop.f32.mrf.mxu0
    %v527 = vadd.f32 %v414, %v526
    %528 = vmatmul.f32.gmra.mxu0 %v465
    %v529 = vpop.f32.mrf.mxu0
    %v530 = vadd.f32 %v417, %v529
    %531 = vmatmul.f32.gmra.mxu0 %v468
    %v532 = vpop.f32.mrf.mxu0
    %v533 = vadd.f32 %v420, %v532
    %534 = vmatmul.f32.gmra.mxu0 %v471
    %v535 = vpop.f32.mrf.mxu0
    %v536 = vadd.f32 %v423, %v535
    %537 = vmatmul.f32.gmra.mxu0 %v474
    %v538 = vpop.f32.mrf.mxu0
    %v539 = vadd.f32 %v426, %v538
    %540 = vmatmul.f32.gmra.mxu0 %v477
    %v541 = vpop.f32.mrf.mxu0
    %v542 = vadd.f32 %v429, %v541
    %543 = vmatmul.f32.gmra.mxu0 %v480
    %v544 = vpop.f32.mrf.mxu0
    %v545 = vadd.f32 %v432, %v544
    %546 = vmatmul.f32.gmra.mxu0 %v483
    %v547 = vpop.f32.mrf.mxu0
    %v548 = vadd.f32 %v435, %v547
    %549 = vmatmul.f32.gmra.mxu0 %v486
    %v550 = vpop.f32.mrf.mxu0
    %v551 = vadd.f32 %v438, %v550
    %552 = vmatmul.f32.gmra.mxu0 %v489
    %v553 = vpop.f32.mrf.mxu0
    %v554 = vadd.f32 %v441, %v553
    %555 = vmatmul.f32.gmra.mxu0 %v492
    %v556 = vpop.f32.mrf.mxu0
    %v557 = vadd.f32 %v444, %v556
    %558 = vmatmul.f32.gmra.mxu0 %v495
    %v559 = vpop.f32.mrf.mxu0
    %v560 = vadd.f32 %v447, %v559
    %561 = vmatmul.f32.gmra.mxu0 %v498
    %v562 = vpop.f32.mrf.mxu0
    %v563 = vadd.f32 %v450, %v562
    %564 = vmatmul.f32.gmra.mxu0 %v501
    %v565 = vpop.f32.mrf.mxu0
    %v566 = vadd.f32 %v453, %v565
    %567 = vdwg.mxu0
    %v568 = vld [vmem:[%s2] sm:$0xff]
    %v569 = vld [vmem:[%s2 + $0x8] sm:$0xff]
    %v570 = vld [vmem:[%s2 + $0x10] sm:$0xff]
    %v571 = vld [vmem:[%s2 + $0x18] sm:$0xff]
    %v572 = vld [vmem:[%s2 + $0x20] sm:$0xff]
    %v573 = vld [vmem:[%s2 + $0x28] sm:$0xff]
    %v574 = vld [vmem:[%s2 + $0x30] sm:$0xff]
    %v575 = vld [vmem:[%s2 + $0x38] sm:$0xff]
    %v576 = vld [vmem:[%s2 + $0x40] sm:$0xff]
    %v577 = vld [vmem:[%s2 + $0x48] sm:$0xff]
    %v578 = vld [vmem:[%s2 + $0x50] sm:$0xff]
    %v579 = vld [vmem:[%s2 + $0x58] sm:$0xff]
    %v580 = vld [vmem:[%s2 + $0x60] sm:$0xff]
    %v581 = vld [vmem:[%s2 + $0x68] sm:$0xff]
    %v582 = vld [vmem:[%s2 + $0x70] sm:$0xff]
    %v583 = vld [vmem:[%s2 + $0x78] sm:$0xff]
    %584 = vmatpush.msra.mxu0 0.0
    %585 = vmatpush.msra.mxu0 0.0
    %586 = vmatpush.msra.mxu0 0.0
    %587 = vmatpush.msra.mxu0 0.0
    %588 = vmatpush.msra.mxu0 0.0
    %589 = vmatpush.msra.mxu0 0.0
    %590 = vmatpush.msra.mxu0 0.0
    %591 = vmatpush.msra.mxu0 0.0
    %592 = vmatpush.msra.mxu0 %v306
    %593 = vmatpush.msra.mxu0 %v305
    %594 = vmatpush.msra.mxu0 %v304
    %595 = vmatpush.msra.mxu0 %v303
    %596 = vmatpush.msra.mxu0 %v302
    %597 = vmatpush.msra.mxu0 %v301
    %598 = vmatpush.msra.mxu0 %v300
    %599 = vmatpush.msra.mxu0 %v299
    %600 = vmatmul.f32.gmra.mxu0 %v456
    %v601 = vpop.f32.mrf.mxu0
    %v602 = vadd.f32 0.0, %v601
    %603 = vmatmul.f32.gmra.mxu0 %v459
    %v604 = vpop.f32.mrf.mxu0
    %v605 = vadd.f32 0.0, %v604
    %606 = vmatmul.f32.gmra.mxu0 %v462
    %v607 = vpop.f32.mrf.mxu0
    %v608 = vadd.f32 0.0, %v607
    %609 = vmatmul.f32.gmra.mxu0 %v465
    %v610 = vpop.f32.mrf.mxu0
    %v611 = vadd.f32 0.0, %v610
    %612 = vmatmul.f32.gmra.mxu0 %v468
    %v613 = vpop.f32.mrf.mxu0
    %v614 = vadd.f32 0.0, %v613
    %615 = vmatmul.f32.gmra.mxu0 %v471
    %v616 = vpop.f32.mrf.mxu0
    %v617 = vadd.f32 0.0, %v616
    %618 = vmatmul.f32.gmra.mxu0 %v474
    %v619 = vpop.f32.mrf.mxu0
    %v620 = vadd.f32 0.0, %v619
    %621 = vmatmul.f32.gmra.mxu0 %v477
    %v622 = vpop.f32.mrf.mxu0
    %v623 = vadd.f32 0.0, %v622
    %624 = vmatmul.f32.gmra.mxu0 %v480
    %v625 = vpop.f32.mrf.mxu0
    %v626 = vadd.f32 0.0, %v625
    %627 = vmatmul.f32.gmra.mxu0 %v483
    %v628 = vpop.f32.mrf.mxu0
    %v629 = vadd.f32 0.0, %v628
    %630 = vmatmul.f32.gmra.mxu0 %v486
    %v631 = vpop.f32.mrf.mxu0
    %v632 = vadd.f32 0.0, %v631
    %633 = vmatmul.f32.gmra.mxu0 %v489
    %v634 = vpop.f32.mrf.mxu0
    %v635 = vadd.f32 0.0, %v634
    %636 = vmatmul.f32.gmra.mxu0 %v492
    %v637 = vpop.f32.mrf.mxu0
    %v638 = vadd.f32 0.0, %v637
    %639 = vmatmul.f32.gmra.mxu0 %v495
    %v640 = vpop.f32.mrf.mxu0
    %v641 = vadd.f32 0.0, %v640
    %642 = vmatmul.f32.gmra.mxu0 %v498
    %v643 = vpop.f32.mrf.mxu0
    %v644 = vadd.f32 0.0, %v643
    %645 = vmatmul.f32.gmra.mxu0 %v501
    %v646 = vpop.f32.mrf.mxu0
    %v647 = vadd.f32 0.0, %v646
    %648 = vdwg.mxu0
    %v650 = vsel %vm341, %v568, 0
    %v653 = vsel %vm341, %v569, 0
    %v656 = vsel %vm341, %v570, 0
    %v659 = vsel %vm341, %v571, 0
    %v662 = vsel %vm341, %v572, 0
    %v665 = vsel %vm341, %v573, 0
    %v668 = vsel %vm341, %v574, 0
    %v671 = vsel %vm341, %v575, 0
    %v674 = vsel %vm341, %v576, 0
    %v677 = vsel %vm341, %v577, 0
    %v680 = vsel %vm341, %v578, 0
    %v683 = vsel %vm341, %v579, 0
    %v686 = vsel %vm341, %v580, 0
    %v689 = vsel %vm341, %v581, 0
    %v692 = vsel %vm341, %v582, 0
    %v695 = vsel %vm341, %v583, 0
    %697 = vmatpush.msra.mxu0 0.0
    %698 = vmatpush.msra.mxu0 0.0
    %699 = vmatpush.msra.mxu0 0.0
    %700 = vmatpush.msra.mxu0 0.0
    %701 = vmatpush.msra.mxu0 0.0
    %702 = vmatpush.msra.mxu0 0.0
    %703 = vmatpush.msra.mxu0 0.0
    %704 = vmatpush.msra.mxu0 0.0
    %705 = vmatpush.msra.mxu0 %v290
    %706 = vmatpush.msra.mxu0 %v289
    %707 = vmatpush.msra.mxu0 %v288
    %708 = vmatpush.msra.mxu0 %v287
    %709 = vmatpush.msra.mxu0 %v286
    %710 = vmatpush.msra.mxu0 %v285
    %711 = vmatpush.msra.mxu0 %v284
    %712 = vmatpush.msra.mxu0 %v283
    %713 = vmatmul.f32.gmra.mxu0 %v650
    %v714 = vpop.f32.mrf.mxu0
    %v715 = vadd.f32 %v602, %v714
    %716 = vmatmul.f32.gmra.mxu0 %v653
    %v717 = vpop.f32.mrf.mxu0
    %v718 = vadd.f32 %v605, %v717
    %719 = vmatmul.f32.gmra.mxu0 %v656
    %v720 = vpop.f32.mrf.mxu0
    %v721 = vadd.f32 %v608, %v720
    %722 = vmatmul.f32.gmra.mxu0 %v659
    %v723 = vpop.f32.mrf.mxu0
    %v724 = vadd.f32 %v611, %v723
    %725 = vmatmul.f32.gmra.mxu0 %v662
    %v726 = vpop.f32.mrf.mxu0
    %v727 = vadd.f32 %v614, %v726
    %728 = vmatmul.f32.gmra.mxu0 %v665
    %v729 = vpop.f32.mrf.mxu0
    %v730 = vadd.f32 %v617, %v729
    %731 = vmatmul.f32.gmra.mxu0 %v668
    %v732 = vpop.f32.mrf.mxu0
    %v733 = vadd.f32 %v620, %v732
    %734 = vmatmul.f32.gmra.mxu0 %v671
    %v735 = vpop.f32.mrf.mxu0
    %v736 = vadd.f32 %v623, %v735
    %737 = vmatmul.f32.gmra.mxu0 %v674
    %v738 = vpop.f32.mrf.mxu0
    %v739 = vadd.f32 %v626, %v738
    %740 = vmatmul.f32.gmra.mxu0 %v677
    %v741 = vpop.f32.mrf.mxu0
    %v742 = vadd.f32 %v629, %v741
    %743 = vmatmul.f32.gmra.mxu0 %v680
    %v744 = vpop.f32.mrf.mxu0
    %v745 = vadd.f32 %v632, %v744
    %746 = vmatmul.f32.gmra.mxu0 %v683
    %v747 = vpop.f32.mrf.mxu0
    %v748 = vadd.f32 %v635, %v747
    %749 = vmatmul.f32.gmra.mxu0 %v686
    %v750 = vpop.f32.mrf.mxu0
    %v751 = vadd.f32 %v638, %v750
    %752 = vmatmul.f32.gmra.mxu0 %v689
    %v753 = vpop.f32.mrf.mxu0
    %v754 = vadd.f32 %v641, %v753
    %755 = vmatmul.f32.gmra.mxu0 %v692
    %v756 = vpop.f32.mrf.mxu0
    %v757 = vadd.f32 %v644, %v756
    %758 = vmatmul.f32.gmra.mxu0 %v695
    %v759 = vpop.f32.mrf.mxu0
    %v760 = vadd.f32 %v647, %v759
    %761 = vdwg.mxu0
    %770 = vrot.lane.b32.xlu0 %v299, 8
    %v771 = vpop.permute.xlu0 %770
    %772 = vrot.lane.b32.xlu0 %v300, 8
    %v773 = vpop.permute.xlu0 %772
    %774 = vrot.lane.b32.xlu0 %v301, 8
    %v775 = vpop.permute.xlu0 %774
    %776 = vrot.lane.b32.xlu0 %v302, 8
    %v777 = vpop.permute.xlu0 %776
    %778 = vrot.lane.b32.xlu0 %v303, 8
    %v779 = vpop.permute.xlu0 %778
    %780 = vrot.lane.b32.xlu0 %v304, 8
    %v781 = vpop.permute.xlu0 %780
    %782 = vrot.lane.b32.xlu0 %v305, 8
    %v783 = vpop.permute.xlu0 %782
    %784 = vrot.lane.b32.xlu0 %v306, 8
    %v785 = vpop.permute.xlu0 %784
    %v794 = vsel %vm65, 0.0, %v771
    %v795 = vsel %vm65, 0.0, %v773
    %v796 = vsel %vm65, 0.0, %v775
    %v797 = vsel %vm65, 0.0, %v777
    %v798 = vsel %vm65, 0.0, %v779
    %v799 = vsel %vm65, 0.0, %v781
    %v800 = vsel %vm65, 0.0, %v783
    %v801 = vsel %vm65, 0.0, %v785
    %810 = vrot.lane.b32.xlu0 %v283, 120
    %v811 = vpop.permute.xlu0 %810
    %812 = vrot.lane.b32.xlu0 %v284, 120
    %v813 = vpop.permute.xlu0 %812
    %814 = vrot.lane.b32.xlu0 %v285, 120
    %v815 = vpop.permute.xlu0 %814
    %816 = vrot.lane.b32.xlu0 %v286, 120
    %v817 = vpop.permute.xlu0 %816
    %818 = vrot.lane.b32.xlu0 %v287, 120
    %v819 = vpop.permute.xlu0 %818
    %820 = vrot.lane.b32.xlu0 %v288, 120
    %v821 = vpop.permute.xlu0 %820
    %822 = vrot.lane.b32.xlu0 %v289, 120
    %v823 = vpop.permute.xlu0 %822
    %824 = vrot.lane.b32.xlu0 %v290, 120
    %v825 = vpop.permute.xlu0 %824
    %vm834 = vcmask 195584
    %v835 = vsel %vm834, %v811, 0.0
    %v836 = vsel %vm834, %v813, 0.0
    %v837 = vsel %vm834, %v815, 0.0
    %v838 = vsel %vm834, %v817, 0.0
    %v839 = vsel %vm834, %v819, 0.0
    %v840 = vsel %vm834, %v821, 0.0
    %v841 = vsel %vm834, %v823, 0.0
    %v842 = vsel %vm834, %v825, 0.0
    %843 = vmatpush.msra.mxu0 0.0
    %844 = vmatpush.msra.mxu0 0.0
    %845 = vmatpush.msra.mxu0 0.0
    %846 = vmatpush.msra.mxu0 0.0
    %847 = vmatpush.msra.mxu0 0.0
    %848 = vmatpush.msra.mxu0 0.0
    %849 = vmatpush.msra.mxu0 0.0
    %850 = vmatpush.msra.mxu0 0.0
    %851 = vmatpush.msra.mxu0 %v801
    %852 = vmatpush.msra.mxu0 %v800
    %853 = vmatpush.msra.mxu0 %v799
    %854 = vmatpush.msra.mxu0 %v798
    %855 = vmatpush.msra.mxu0 %v797
    %856 = vmatpush.msra.mxu0 %v796
    %857 = vmatpush.msra.mxu0 %v795
    %858 = vmatpush.msra.mxu0 %v794
    %859 = vmatmul.f32.gmra.mxu0 %v650
    %v860 = vpop.f32.mrf.mxu0
    %v861 = vadd.f32 0.0, %v860
    %862 = vmatmul.f32.gmra.mxu0 %v653
    %v863 = vpop.f32.mrf.mxu0
    %v864 = vadd.f32 0.0, %v863
    %865 = vmatmul.f32.gmra.mxu0 %v656
    %v866 = vpop.f32.mrf.mxu0
    %v867 = vadd.f32 0.0, %v866
    %868 = vmatmul.f32.gmra.mxu0 %v659
    %v869 = vpop.f32.mrf.mxu0
    %v870 = vadd.f32 0.0, %v869
    %871 = vmatmul.f32.gmra.mxu0 %v662
    %v872 = vpop.f32.mrf.mxu0
    %v873 = vadd.f32 0.0, %v872
    %874 = vmatmul.f32.gmra.mxu0 %v665
    %v875 = vpop.f32.mrf.mxu0
    %v876 = vadd.f32 0.0, %v875
    %877 = vmatmul.f32.gmra.mxu0 %v668
    %v878 = vpop.f32.mrf.mxu0
    %v879 = vadd.f32 0.0, %v878
    %880 = vmatmul.f32.gmra.mxu0 %v671
    %v881 = vpop.f32.mrf.mxu0
    %v882 = vadd.f32 0.0, %v881
    %883 = vmatmul.f32.gmra.mxu0 %v674
    %v884 = vpop.f32.mrf.mxu0
    %v885 = vadd.f32 0.0, %v884
    %886 = vmatmul.f32.gmra.mxu0 %v677
    %v887 = vpop.f32.mrf.mxu0
    %v888 = vadd.f32 0.0, %v887
    %889 = vmatmul.f32.gmra.mxu0 %v680
    %v890 = vpop.f32.mrf.mxu0
    %v891 = vadd.f32 0.0, %v890
    %892 = vmatmul.f32.gmra.mxu0 %v683
    %v893 = vpop.f32.mrf.mxu0
    %v894 = vadd.f32 0.0, %v893
    %895 = vmatmul.f32.gmra.mxu0 %v686
    %v896 = vpop.f32.mrf.mxu0
    %v897 = vadd.f32 0.0, %v896
    %898 = vmatmul.f32.gmra.mxu0 %v689
    %v899 = vpop.f32.mrf.mxu0
    %v900 = vadd.f32 0.0, %v899
    %901 = vmatmul.f32.gmra.mxu0 %v692
    %v902 = vpop.f32.mrf.mxu0
    %v903 = vadd.f32 0.0, %v902
    %904 = vmatmul.f32.gmra.mxu0 %v695
    %v905 = vpop.f32.mrf.mxu0
    %v906 = vadd.f32 0.0, %v905
    %907 = vdwg.mxu0
    %v908 = vadd.f32 %v521, %v861
    %v909 = vadd.f32 %v524, %v864
    %v910 = vadd.f32 %v527, %v867
    %v911 = vadd.f32 %v530, %v870
    %v912 = vadd.f32 %v533, %v873
    %v913 = vadd.f32 %v536, %v876
    %v914 = vadd.f32 %v539, %v879
    %v915 = vadd.f32 %v542, %v882
    %v916 = vadd.f32 %v545, %v885
    %v917 = vadd.f32 %v548, %v888
    %v918 = vadd.f32 %v551, %v891
    %v919 = vadd.f32 %v554, %v894
    %v920 = vadd.f32 %v557, %v897
    %v921 = vadd.f32 %v560, %v900
    %v922 = vadd.f32 %v563, %v903
    %v923 = vadd.f32 %v566, %v906
    %924 = vmatpush.msra.mxu0 0.0
    %925 = vmatpush.msra.mxu0 0.0
    %926 = vmatpush.msra.mxu0 0.0
    %927 = vmatpush.msra.mxu0 0.0
    %928 = vmatpush.msra.mxu0 0.0
    %929 = vmatpush.msra.mxu0 0.0
    %930 = vmatpush.msra.mxu0 0.0
    %931 = vmatpush.msra.mxu0 0.0
    %932 = vmatpush.msra.mxu0 %v842
    %933 = vmatpush.msra.mxu0 %v841
    %934 = vmatpush.msra.mxu0 %v840
    %935 = vmatpush.msra.mxu0 %v839
    %936 = vmatpush.msra.mxu0 %v838
    %937 = vmatpush.msra.mxu0 %v837
    %938 = vmatpush.msra.mxu0 %v836
    %939 = vmatpush.msra.mxu0 %v835
    %940 = vmatmul.f32.gmra.mxu0 %v343
    %v941 = vpop.f32.mrf.mxu0
    %v942 = vadd.f32 0.0, %v941
    %943 = vmatmul.f32.gmra.mxu0 %v346
    %v944 = vpop.f32.mrf.mxu0
    %v945 = vadd.f32 0.0, %v944
    %946 = vmatmul.f32.gmra.mxu0 %v349
    %v947 = vpop.f32.mrf.mxu0
    %v948 = vadd.f32 0.0, %v947
    %949 = vmatmul.f32.gmra.mxu0 %v352
    %v950 = vpop.f32.mrf.mxu0
    %v951 = vadd.f32 0.0, %v950
    %952 = vmatmul.f32.gmra.mxu0 %v355
    %v953 = vpop.f32.mrf.mxu0
    %v954 = vadd.f32 0.0, %v953
    %955 = vmatmul.f32.gmra.mxu0 %v358
    %v956 = vpop.f32.mrf.mxu0
    %v957 = vadd.f32 0.0, %v956
    %958 = vmatmul.f32.gmra.mxu0 %v361
    %v959 = vpop.f32.mrf.mxu0
    %v960 = vadd.f32 0.0, %v959
    %961 = vmatmul.f32.gmra.mxu0 %v364
    %v962 = vpop.f32.mrf.mxu0
    %v963 = vadd.f32 0.0, %v962
    %964 = vmatmul.f32.gmra.mxu0 %v367
    %v965 = vpop.f32.mrf.mxu0
    %v966 = vadd.f32 0.0, %v965
    %967 = vmatmul.f32.gmra.mxu0 %v370
    %v968 = vpop.f32.mrf.mxu0
    %v969 = vadd.f32 0.0, %v968
    %970 = vmatmul.f32.gmra.mxu0 %v373
    %v971 = vpop.f32.mrf.mxu0
    %v972 = vadd.f32 0.0, %v971
    %973 = vmatmul.f32.gmra.mxu0 %v376
    %v974 = vpop.f32.mrf.mxu0
    %v975 = vadd.f32 0.0, %v974
    %976 = vmatmul.f32.gmra.mxu0 %v379
    %v977 = vpop.f32.mrf.mxu0
    %v978 = vadd.f32 0.0, %v977
    %979 = vmatmul.f32.gmra.mxu0 %v382
    %v980 = vpop.f32.mrf.mxu0
    %v981 = vadd.f32 0.0, %v980
    %982 = vmatmul.f32.gmra.mxu0 %v385
    %v983 = vpop.f32.mrf.mxu0
    %v984 = vadd.f32 0.0, %v983
    %985 = vmatmul.f32.gmra.mxu0 %v388
    %v986 = vpop.f32.mrf.mxu0
    %v987 = vadd.f32 0.0, %v986
    %988 = vdwg.mxu0
    %v989 = vadd.f32 %v715, %v942
    %v990 = vadd.f32 %v718, %v945
    %v991 = vadd.f32 %v721, %v948
    %v992 = vadd.f32 %v724, %v951
    %v993 = vadd.f32 %v727, %v954
    %v994 = vadd.f32 %v730, %v957
    %v995 = vadd.f32 %v733, %v960
    %v996 = vadd.f32 %v736, %v963
    %v997 = vadd.f32 %v739, %v966
    %v998 = vadd.f32 %v742, %v969
    %v999 = vadd.f32 %v745, %v972
    %v1000 = vadd.f32 %v748, %v975
    %v1001 = vadd.f32 %v751, %v978
    %v1002 = vadd.f32 %v754, %v981
    %v1003 = vadd.f32 %v757, %v984
    %v1004 = vadd.f32 %v760, %v987
    %v1005 = vmax.f32 %v908, %v989
    %v1006 = vmax.f32 %v909, %v990
    %v1007 = vmax.f32 %v910, %v991
    %v1008 = vmax.f32 %v911, %v992
    %v1009 = vmax.f32 %v912, %v993
    %v1010 = vmax.f32 %v913, %v994
    %v1011 = vmax.f32 %v914, %v995
    %v1012 = vmax.f32 %v915, %v996
    %v1013 = vmax.f32 %v916, %v997
    %v1014 = vmax.f32 %v917, %v998
    %v1015 = vmax.f32 %v918, %v999
    %v1016 = vmax.f32 %v919, %v1000
    %v1017 = vmax.f32 %v920, %v1001
    %v1018 = vmax.f32 %v921, %v1002
    %v1019 = vmax.f32 %v922, %v1003
    %v1020 = vmax.f32 %v923, %v1004
    %v1021 = vld [vmem:[%s3] sm:$0xff]
    %v1022 = vld [vmem:[%s3 + $0x8] sm:$0xff]
    %v1023 = vld [vmem:[%s3 + $0x10] sm:$0xff]
    %v1024 = vld [vmem:[%s3 + $0x18] sm:$0xff]
    %v1025 = vld [vmem:[%s3 + $0x20] sm:$0xff]
    %v1026 = vld [vmem:[%s3 + $0x28] sm:$0xff]
    %v1027 = vld [vmem:[%s3 + $0x30] sm:$0xff]
    %v1028 = vld [vmem:[%s3 + $0x38] sm:$0xff]
    %v1029 = vld [vmem:[%s3 + $0x40] sm:$0xff]
    %v1030 = vld [vmem:[%s3 + $0x48] sm:$0xff]
    %v1031 = vld [vmem:[%s3 + $0x50] sm:$0xff]
    %v1032 = vld [vmem:[%s3 + $0x58] sm:$0xff]
    %v1033 = vld [vmem:[%s3 + $0x60] sm:$0xff]
    %v1034 = vld [vmem:[%s3 + $0x68] sm:$0xff]
    %v1035 = vld [vmem:[%s3 + $0x70] sm:$0xff]
    %v1036 = vld [vmem:[%s3 + $0x78] sm:$0xff]
    %1038 = vset.pattern.permute.xlu0 0
    %1039 = vperm.xlu0 %1038, %v1021
    %v1040 = vpop.permute.xlu0 %1039
    %1043 = vset.pattern.permute.xlu0 0
    %1044 = vperm.xlu0 %1043, %v1022
    %v1045 = vpop.permute.xlu0 %1044
    %1048 = vset.pattern.permute.xlu0 0
    %1049 = vperm.xlu0 %1048, %v1023
    %v1050 = vpop.permute.xlu0 %1049
    %1053 = vset.pattern.permute.xlu0 0
    %1054 = vperm.xlu0 %1053, %v1024
    %v1055 = vpop.permute.xlu0 %1054
    %1058 = vset.pattern.permute.xlu0 0
    %1059 = vperm.xlu0 %1058, %v1025
    %v1060 = vpop.permute.xlu0 %1059
    %1063 = vset.pattern.permute.xlu0 0
    %1064 = vperm.xlu0 %1063, %v1026
    %v1065 = vpop.permute.xlu0 %1064
    %1068 = vset.pattern.permute.xlu0 0
    %1069 = vperm.xlu0 %1068, %v1027
    %v1070 = vpop.permute.xlu0 %1069
    %1073 = vset.pattern.permute.xlu0 0
    %1074 = vperm.xlu0 %1073, %v1028
    %v1075 = vpop.permute.xlu0 %1074
    %1078 = vset.pattern.permute.xlu0 0
    %1079 = vperm.xlu0 %1078, %v1029
    %v1080 = vpop.permute.xlu0 %1079
    %1083 = vset.pattern.permute.xlu0 0
    %1084 = vperm.xlu0 %1083, %v1030
    %v1085 = vpop.permute.xlu0 %1084
    %1088 = vset.pattern.permute.xlu0 0
    %1089 = vperm.xlu0 %1088, %v1031
    %v1090 = vpop.permute.xlu0 %1089
    %1093 = vset.pattern.permute.xlu0 0
    %1094 = vperm.xlu0 %1093, %v1032
    %v1095 = vpop.permute.xlu0 %1094
    %1098 = vset.pattern.permute.xlu0 0
    %1099 = vperm.xlu0 %1098, %v1033
    %v1100 = vpop.permute.xlu0 %1099
    %1103 = vset.pattern.permute.xlu0 0
    %1104 = vperm.xlu0 %1103, %v1034
    %v1105 = vpop.permute.xlu0 %1104
    %1108 = vset.pattern.permute.xlu0 0
    %1109 = vperm.xlu0 %1108, %v1035
    %v1110 = vpop.permute.xlu0 %1109
    %1113 = vset.pattern.permute.xlu0 0
    %1114 = vperm.xlu0 %1113, %v1036
    %v1115 = vpop.permute.xlu0 %1114
    %v1117 = vadd.f32 %v1005, %v1040
    %v1118 = vadd.f32 %v1006, %v1045
    %v1119 = vadd.f32 %v1007, %v1050
    %v1120 = vadd.f32 %v1008, %v1055
    %v1121 = vadd.f32 %v1009, %v1060
    %v1122 = vadd.f32 %v1010, %v1065
    %v1123 = vadd.f32 %v1011, %v1070
    %v1124 = vadd.f32 %v1012, %v1075
    %v1125 = vadd.f32 %v1013, %v1080
    %v1126 = vadd.f32 %v1014, %v1085
    %v1127 = vadd.f32 %v1015, %v1090
    %v1128 = vadd.f32 %v1016, %v1095
    %v1129 = vadd.f32 %v1017, %v1100
    %v1130 = vadd.f32 %v1018, %v1105
    %v1131 = vadd.f32 %v1019, %v1110
    %v1132 = vadd.f32 %v1020, %v1115
    %v1133 = vmax.f32 %v1117, 0.0
    %v1134 = vmax.f32 %v1118, 0.0
    %v1135 = vmax.f32 %v1119, 0.0
    %v1136 = vmax.f32 %v1120, 0.0
    %v1137 = vmax.f32 %v1121, 0.0
    %v1138 = vmax.f32 %v1122, 0.0
    %v1139 = vmax.f32 %v1123, 0.0
    %v1140 = vmax.f32 %v1124, 0.0
    %v1141 = vmax.f32 %v1125, 0.0
    %v1142 = vmax.f32 %v1126, 0.0
    %v1143 = vmax.f32 %v1127, 0.0
    %v1144 = vmax.f32 %v1128, 0.0
    %v1145 = vmax.f32 %v1129, 0.0
    %v1146 = vmax.f32 %v1130, 0.0
    %v1147 = vmax.f32 %v1131, 0.0
    %v1148 = vmax.f32 %v1132, 0.0
    %v1149 = vld [vmem:[%s4] sm:$0xff]
    %v1150 = vld [vmem:[%s4 + $0x8] sm:$0xff]
    %v1151 = vld [vmem:[%s4 + $0x10] sm:$0xff]
    %v1152 = vld [vmem:[%s4 + $0x18] sm:$0xff]
    %v1153 = vld [vmem:[%s4 + $0x20] sm:$0xff]
    %v1154 = vld [vmem:[%s4 + $0x28] sm:$0xff]
    %v1155 = vld [vmem:[%s4 + $0x30] sm:$0xff]
    %v1156 = vld [vmem:[%s4 + $0x38] sm:$0xff]
    %s1157 = scalar_lea.vmem %s4, 64
    %v1158 = vld [vmem:[%s1157] sm:$0xff]
    %v1159 = vld [vmem:[%s1157 + $0x8] sm:$0xff]
    %v1160 = vld [vmem:[%s1157 + $0x10] sm:$0xff]
    %v1161 = vld [vmem:[%s1157 + $0x18] sm:$0xff]
    %v1162 = vld [vmem:[%s1157 + $0x20] sm:$0xff]
    %v1163 = vld [vmem:[%s1157 + $0x28] sm:$0xff]
    %v1164 = vld [vmem:[%s1157 + $0x30] sm:$0xff]
    %v1165 = vld [vmem:[%s1157 + $0x38] sm:$0xff]
    %1182 = vrot.lane.b32.xlu0 %v1133, 120
    %v1183 = vpop.permute.xlu0 %1182
    %1184 = vrot.lane.b32.xlu0 %v1134, 120
    %v1185 = vpop.permute.xlu0 %1184
    %1186 = vrot.lane.b32.xlu0 %v1135, 120
    %v1187 = vpop.permute.xlu0 %1186
    %1188 = vrot.lane.b32.xlu0 %v1136, 120
    %v1189 = vpop.permute.xlu0 %1188
    %1190 = vrot.lane.b32.xlu0 %v1137, 120
    %v1191 = vpop.permute.xlu0 %1190
    %1192 = vrot.lane.b32.xlu0 %v1138, 120
    %v1193 = vpop.permute.xlu0 %1192
    %1194 = vrot.lane.b32.xlu0 %v1139, 120
    %v1195 = vpop.permute.xlu0 %1194
    %1196 = vrot.lane.b32.xlu0 %v1140, 120
    %v1197 = vpop.permute.xlu0 %1196
    %1198 = vrot.lane.b32.xlu0 %v1141, 120
    %v1199 = vpop.permute.xlu0 %1198
    %1200 = vrot.lane.b32.xlu0 %v1142, 120
    %v1201 = vpop.permute.xlu0 %1200
    %1202 = vrot.lane.b32.xlu0 %v1143, 120
    %v1203 = vpop.permute.xlu0 %1202
    %1204 = vrot.lane.b32.xlu0 %v1144, 120
    %v1205 = vpop.permute.xlu0 %1204
    %1206 = vrot.lane.b32.xlu0 %v1145, 120
    %v1207 = vpop.permute.xlu0 %1206
    %1208 = vrot.lane.b32.xlu0 %v1146, 120
    %v1209 = vpop.permute.xlu0 %1208
    %1210 = vrot.lane.b32.xlu0 %v1147, 120
    %v1211 = vpop.permute.xlu0 %1210
    %1212 = vrot.lane.b32.xlu0 %v1148, 120
    %v1213 = vpop.permute.xlu0 %1212
    %1230 = vmatpush.msra.mxu0 %v1213
    %1231 = vmatpush.msra.mxu0 %v1211
    %1232 = vmatpush.msra.mxu0 %v1209
    %1233 = vmatpush.msra.mxu0 %v1207
    %1234 = vmatpush.msra.mxu0 %v1205
    %1235 = vmatpush.msra.mxu0 %v1203
    %1236 = vmatpush.msra.mxu0 %v1201
    %1237 = vmatpush.msra.mxu0 %v1199
    %1238 = vmatpush.msra.mxu0 %v1197
    %1239 = vmatpush.msra.mxu0 %v1195
    %1240 = vmatpush.msra.mxu0 %v1193
    %1241 = vmatpush.msra.mxu0 %v1191
    %1242 = vmatpush.msra.mxu0 %v1189
    %1243 = vmatpush.msra.mxu0 %v1187
    %1244 = vmatpush.msra.mxu0 %v1185
    %1245 = vmatpush.msra.mxu0 %v1183
    %1246 = vmatmul.f32.gmra.mxu0 %v1158
    %v1247 = vpop.f32.mrf.mxu0
    %v1248 = vadd.f32 0.0, %v1247
    %1249 = vmatmul.f32.gmra.mxu0 %v1159
    %v1250 = vpop.f32.mrf.mxu0
    %v1251 = vadd.f32 0.0, %v1250
    %1252 = vmatmul.f32.gmra.mxu0 %v1160
    %v1253 = vpop.f32.mrf.mxu0
    %v1254 = vadd.f32 0.0, %v1253
    %1255 = vmatmul.f32.gmra.mxu0 %v1161
    %v1256 = vpop.f32.mrf.mxu0
    %v1257 = vadd.f32 0.0, %v1256
    %1258 = vmatmul.f32.gmra.mxu0 %v1162
    %v1259 = vpop.f32.mrf.mxu0
    %v1260 = vadd.f32 0.0, %v1259
    %1261 = vmatmul.f32.gmra.mxu0 %v1163
    %v1262 = vpop.f32.mrf.mxu0
    %v1263 = vadd.f32 0.0, %v1262
    %1264 = vmatmul.f32.gmra.mxu0 %v1164
    %v1265 = vpop.f32.mrf.mxu0
    %v1266 = vadd.f32 0.0, %v1265
    %1267 = vmatmul.f32.gmra.mxu0 %v1165
    %v1268 = vpop.f32.mrf.mxu0
    %v1269 = vadd.f32 0.0, %v1268
    %1270 = vdwg.mxu0
    %1271 = vmatpush.msra.mxu0 %v1148
    %1272 = vmatpush.msra.mxu0 %v1147
    %1273 = vmatpush.msra.mxu0 %v1146
    %1274 = vmatpush.msra.mxu0 %v1145
    %1275 = vmatpush.msra.mxu0 %v1144
    %1276 = vmatpush.msra.mxu0 %v1143
    %1277 = vmatpush.msra.mxu0 %v1142
    %1278 = vmatpush.msra.mxu0 %v1141
    %1279 = vmatpush.msra.mxu0 %v1140
    %1280 = vmatpush.msra.mxu0 %v1139
    %1281 = vmatpush.msra.mxu0 %v1138
    %1282 = vmatpush.msra.mxu0 %v1137
    %1283 = vmatpush.msra.mxu0 %v1136
    %1284 = vmatpush.msra.mxu0 %v1135
    %1285 = vmatpush.msra.mxu0 %v1134
    %1286 = vmatpush.msra.mxu0 %v1133
    %1287 = vmatmul.f32.gmra.mxu0 %v1149
    %v1288 = vpop.f32.mrf.mxu0
    %v1289 = vadd.f32 %v1248, %v1288
    %1290 = vmatmul.f32.gmra.mxu0 %v1150
    %v1291 = vpop.f32.mrf.mxu0
    %v1292 = vadd.f32 %v1251, %v1291
    %1293 = vmatmul.f32.gmra.mxu0 %v1151
    %v1294 = vpop.f32.mrf.mxu0
    %v1295 = vadd.f32 %v1254, %v1294
    %1296 = vmatmul.f32.gmra.mxu0 %v1152
    %v1297 = vpop.f32.mrf.mxu0
    %v1298 = vadd.f32 %v1257, %v1297
    %1299 = vmatmul.f32.gmra.mxu0 %v1153
    %v1300 = vpop.f32.mrf.mxu0
    %v1301 = vadd.f32 %v1260, %v1300
    %1302 = vmatmul.f32.gmra.mxu0 %v1154
    %v1303 = vpop.f32.mrf.mxu0
    %v1304 = vadd.f32 %v1263, %v1303
    %1305 = vmatmul.f32.gmra.mxu0 %v1155
    %v1306 = vpop.f32.mrf.mxu0
    %v1307 = vadd.f32 %v1266, %v1306
    %1308 = vmatmul.f32.gmra.mxu0 %v1156
    %v1309 = vpop.f32.mrf.mxu0
    %v1310 = vadd.f32 %v1269, %v1309
    %1311 = vdwg.mxu0
    %s1312 = scalar_lea.vmem %s4, 128
    %v1313 = vld [vmem:[%s1312] sm:$0xff]
    %v1314 = vld [vmem:[%s1312 + $0x8] sm:$0xff]
    %v1315 = vld [vmem:[%s1312 + $0x10] sm:$0xff]
    %v1316 = vld [vmem:[%s1312 + $0x18] sm:$0xff]
    %v1317 = vld [vmem:[%s1312 + $0x20] sm:$0xff]
    %v1318 = vld [vmem:[%s1312 + $0x28] sm:$0xff]
    %v1319 = vld [vmem:[%s1312 + $0x30] sm:$0xff]
    %v1320 = vld [vmem:[%s1312 + $0x38] sm:$0xff]
    %1321 = vrot.lane.b32.xlu0 %v1133, 112
    %v1322 = vpop.permute.xlu0 %1321
    %1323 = vrot.lane.b32.xlu0 %v1134, 112
    %v1324 = vpop.permute.xlu0 %1323
    %1325 = vrot.lane.b32.xlu0 %v1135, 112
    %v1326 = vpop.permute.xlu0 %1325
    %1327 = vrot.lane.b32.xlu0 %v1136, 112
    %v1328 = vpop.permute.xlu0 %1327
    %1329 = vrot.lane.b32.xlu0 %v1137, 112
    %v1330 = vpop.permute.xlu0 %1329
    %1331 = vrot.lane.b32.xlu0 %v1138, 112
    %v1332 = vpop.permute.xlu0 %1331
    %1333 = vrot.lane.b32.xlu0 %v1139, 112
    %v1334 = vpop.permute.xlu0 %1333
    %1335 = vrot.lane.b32.xlu0 %v1140, 112
    %v1336 = vpop.permute.xlu0 %1335
    %1337 = vrot.lane.b32.xlu0 %v1141, 112
    %v1338 = vpop.permute.xlu0 %1337
    %1339 = vrot.lane.b32.xlu0 %v1142, 112
    %v1340 = vpop.permute.xlu0 %1339
    %1341 = vrot.lane.b32.xlu0 %v1143, 112
    %v1342 = vpop.permute.xlu0 %1341
    %1343 = vrot.lane.b32.xlu0 %v1144, 112
    %v1344 = vpop.permute.xlu0 %1343
    %1345 = vrot.lane.b32.xlu0 %v1145, 112
    %v1346 = vpop.permute.xlu0 %1345
    %1347 = vrot.lane.b32.xlu0 %v1146, 112
    %v1348 = vpop.permute.xlu0 %1347
    %1349 = vrot.lane.b32.xlu0 %v1147, 112
    %v1350 = vpop.permute.xlu0 %1349
    %1351 = vrot.lane.b32.xlu0 %v1148, 112
    %v1352 = vpop.permute.xlu0 %1351
    %1369 = vmatpush.msra.mxu0 %v1352
    %1370 = vmatpush.msra.mxu0 %v1350
    %1371 = vmatpush.msra.mxu0 %v1348
    %1372 = vmatpush.msra.mxu0 %v1346
    %1373 = vmatpush.msra.mxu0 %v1344
    %1374 = vmatpush.msra.mxu0 %v1342
    %1375 = vmatpush.msra.mxu0 %v1340
    %1376 = vmatpush.msra.mxu0 %v1338
    %1377 = vmatpush.msra.mxu0 %v1336
    %1378 = vmatpush.msra.mxu0 %v1334
    %1379 = vmatpush.msra.mxu0 %v1332
    %1380 = vmatpush.msra.mxu0 %v1330
    %1381 = vmatpush.msra.mxu0 %v1328
    %1382 = vmatpush.msra.mxu0 %v1326
    %1383 = vmatpush.msra.mxu0 %v1324
    %1384 = vmatpush.msra.mxu0 %v1322
    %1385 = vmatmul.f32.gmra.mxu0 %v1313
    %v1386 = vpop.f32.mrf.mxu0
    %v1387 = vadd.f32 0.0, %v1386
    %1388 = vmatmul.f32.gmra.mxu0 %v1314
    %v1389 = vpop.f32.mrf.mxu0
    %v1390 = vadd.f32 0.0, %v1389
    %1391 = vmatmul.f32.gmra.mxu0 %v1315
    %v1392 = vpop.f32.mrf.mxu0
    %v1393 = vadd.f32 0.0, %v1392
    %1394 = vmatmul.f32.gmra.mxu0 %v1316
    %v1395 = vpop.f32.mrf.mxu0
    %v1396 = vadd.f32 0.0, %v1395
    %1397 = vmatmul.f32.gmra.mxu0 %v1317
    %v1398 = vpop.f32.mrf.mxu0
    %v1399 = vadd.f32 0.0, %v1398
    %1400 = vmatmul.f32.gmra.mxu0 %v1318
    %v1401 = vpop.f32.mrf.mxu0
    %v1402 = vadd.f32 0.0, %v1401
    %1403 = vmatmul.f32.gmra.mxu0 %v1319
    %v1404 = vpop.f32.mrf.mxu0
    %v1405 = vadd.f32 0.0, %v1404
    %1406 = vmatmul.f32.gmra.mxu0 %v1320
    %v1407 = vpop.f32.mrf.mxu0
    %v1408 = vadd.f32 0.0, %v1407
    %1409 = vdwg.mxu0
    %v1410 = vadd.f32 %v1289, %v1387
    %v1411 = vadd.f32 %v1292, %v1390
    %v1412 = vadd.f32 %v1295, %v1393
    %v1413 = vadd.f32 %v1298, %v1396
    %v1414 = vadd.f32 %v1301, %v1399
    %v1415 = vadd.f32 %v1304, %v1402
    %v1416 = vadd.f32 %v1307, %v1405
    %v1417 = vadd.f32 %v1310, %v1408
    %s1418 = scalar_lea.vmem %s4, 192
    %v1419 = vld [vmem:[%s1418] sm:$0xff]
    %v1420 = vld [vmem:[%s1418 + $0x8] sm:$0xff]
    %v1421 = vld [vmem:[%s1418 + $0x10] sm:$0xff]
    %v1422 = vld [vmem:[%s1418 + $0x18] sm:$0xff]
    %v1423 = vld [vmem:[%s1418 + $0x20] sm:$0xff]
    %v1424 = vld [vmem:[%s1418 + $0x28] sm:$0xff]
    %v1425 = vld [vmem:[%s1418 + $0x30] sm:$0xff]
    %v1426 = vld [vmem:[%s1418 + $0x38] sm:$0xff]
    %1427 = vrot.lane.b32.xlu0 %v1133, 104
    %v1428 = vpop.permute.xlu0 %1427
    %1429 = vrot.lane.b32.xlu0 %v1134, 104
    %v1430 = vpop.permute.xlu0 %1429
    %1431 = vrot.lane.b32.xlu0 %v1135, 104
    %v1432 = vpop.permute.xlu0 %1431
    %1433 = vrot.lane.b32.xlu0 %v1136, 104
    %v1434 = vpop.permute.xlu0 %1433
    %1435 = vrot.lane.b32.xlu0 %v1137, 104
    %v1436 = vpop.permute.xlu0 %1435
    %1437 = vrot.lane.b32.xlu0 %v1138, 104
    %v1438 = vpop.permute.xlu0 %1437
    %1439 = vrot.lane.b32.xlu0 %v1139, 104
    %v1440 = vpop.permute.xlu0 %1439
    %1441 = vrot.lane.b32.xlu0 %v1140, 104
    %v1442 = vpop.permute.xlu0 %1441
    %1443 = vrot.lane.b32.xlu0 %v1141, 104
    %v1444 = vpop.permute.xlu0 %1443
    %1445 = vrot.lane.b32.xlu0 %v1142, 104
    %v1446 = vpop.permute.xlu0 %1445
    %1447 = vrot.lane.b32.xlu0 %v1143, 104
    %v1448 = vpop.permute.xlu0 %1447
    %1449 = vrot.lane.b32.xlu0 %v1144, 104
    %v1450 = vpop.permute.xlu0 %1449
    %1451 = vrot.lane.b32.xlu0 %v1145, 104
    %v1452 = vpop.permute.xlu0 %1451
    %1453 = vrot.lane.b32.xlu0 %v1146, 104
    %v1454 = vpop.permute.xlu0 %1453
    %1455 = vrot.lane.b32.xlu0 %v1147, 104
    %v1456 = vpop.permute.xlu0 %1455
    %1457 = vrot.lane.b32.xlu0 %v1148, 104
    %v1458 = vpop.permute.xlu0 %1457
    %1475 = vmatpush.msra.mxu0 %v1458
    %1476 = vmatpush.msra.mxu0 %v1456
    %1477 = vmatpush.msra.mxu0 %v1454
    %1478 = vmatpush.msra.mxu0 %v1452
    %1479 = vmatpush.msra.mxu0 %v1450
    %1480 = vmatpush.msra.mxu0 %v1448
    %1481 = vmatpush.msra.mxu0 %v1446
    %1482 = vmatpush.msra.mxu0 %v1444
    %1483 = vmatpush.msra.mxu0 %v1442
    %1484 = vmatpush.msra.mxu0 %v1440
    %1485 = vmatpush.msra.mxu0 %v1438
    %1486 = vmatpush.msra.mxu0 %v1436
    %1487 = vmatpush.msra.mxu0 %v1434
    %1488 = vmatpush.msra.mxu0 %v1432
    %1489 = vmatpush.msra.mxu0 %v1430
    %1490 = vmatpush.msra.mxu0 %v1428
    %1491 = vmatmul.f32.gmra.mxu0 %v1419
    %v1492 = vpop.f32.mrf.mxu0
    %v1493 = vadd.f32 0.0, %v1492
    %1494 = vmatmul.f32.gmra.mxu0 %v1420
    %v1495 = vpop.f32.mrf.mxu0
    %v1496 = vadd.f32 0.0, %v1495
    %1497 = vmatmul.f32.gmra.mxu0 %v1421
    %v1498 = vpop.f32.mrf.mxu0
    %v1499 = vadd.f32 0.0, %v1498
    %1500 = vmatmul.f32.gmra.mxu0 %v1422
    %v1501 = vpop.f32.mrf.mxu0
    %v1502 = vadd.f32 0.0, %v1501
    %1503 = vmatmul.f32.gmra.mxu0 %v1423
    %v1504 = vpop.f32.mrf.mxu0
    %v1505 = vadd.f32 0.0, %v1504
    %1506 = vmatmul.f32.gmra.mxu0 %v1424
    %v1507 = vpop.f32.mrf.mxu0
    %v1508 = vadd.f32 0.0, %v1507
    %1509 = vmatmul.f32.gmra.mxu0 %v1425
    %v1510 = vpop.f32.mrf.mxu0
    %v1511 = vadd.f32 0.0, %v1510
    %1512 = vmatmul.f32.gmra.mxu0 %v1426
    %v1513 = vpop.f32.mrf.mxu0
    %v1514 = vadd.f32 0.0, %v1513
    %1515 = vdwg.mxu0
    %v1516 = vadd.f32 %v1410, %v1493
    %v1517 = vadd.f32 %v1411, %v1496
    %v1518 = vadd.f32 %v1412, %v1499
    %v1519 = vadd.f32 %v1413, %v1502
    %v1520 = vadd.f32 %v1414, %v1505
    %v1521 = vadd.f32 %v1415, %v1508
    %v1522 = vadd.f32 %v1416, %v1511
    %v1523 = vadd.f32 %v1417, %v1514
    %v1524 = vld [vmem:[%s5] sm:$0xff]
    %v1525 = vld [vmem:[%s5 + $0x8] sm:$0xff]
    %v1526 = vld [vmem:[%s5 + $0x10] sm:$0xff]
    %v1527 = vld [vmem:[%s5 + $0x18] sm:$0xff]
    %v1528 = vld [vmem:[%s5 + $0x20] sm:$0xff]
    %v1529 = vld [vmem:[%s5 + $0x28] sm:$0xff]
    %v1530 = vld [vmem:[%s5 + $0x30] sm:$0xff]
    %v1531 = vld [vmem:[%s5 + $0x38] sm:$0xff]
    %1533 = vset.pattern.permute.xlu0 0
    %1534 = vperm.xlu0 %1533, %v1524
    %v1535 = vpop.permute.xlu0 %1534
    %1538 = vset.pattern.permute.xlu0 0
    %1539 = vperm.xlu0 %1538, %v1525
    %v1540 = vpop.permute.xlu0 %1539
    %1543 = vset.pattern.permute.xlu0 0
    %1544 = vperm.xlu0 %1543, %v1526
    %v1545 = vpop.permute.xlu0 %1544
    %1548 = vset.pattern.permute.xlu0 0
    %1549 = vperm.xlu0 %1548, %v1527
    %v1550 = vpop.permute.xlu0 %1549
    %1553 = vset.pattern.permute.xlu0 0
    %1554 = vperm.xlu0 %1553, %v1528
    %v1555 = vpop.permute.xlu0 %1554
    %1558 = vset.pattern.permute.xlu0 0
    %1559 = vperm.xlu0 %1558, %v1529
    %v1560 = vpop.permute.xlu0 %1559
    %1563 = vset.pattern.permute.xlu0 0
    %1564 = vperm.xlu0 %1563, %v1530
    %v1565 = vpop.permute.xlu0 %1564
    %1568 = vset.pattern.permute.xlu0 0
    %1569 = vperm.xlu0 %1568, %v1531
    %v1570 = vpop.permute.xlu0 %1569
    %v1572 = vadd.f32 %v1516, %v1535
    %v1573 = vadd.f32 %v1517, %v1540
    %v1574 = vadd.f32 %v1518, %v1545
    %v1575 = vadd.f32 %v1519, %v1550
    %v1576 = vadd.f32 %v1520, %v1555
    %v1577 = vadd.f32 %v1521, %v1560
    %v1578 = vadd.f32 %v1522, %v1565
    %v1579 = vadd.f32 %v1523, %v1570
    %v1580 = vmax.f32 %v1572, 0.0
    %v1581 = vmax.f32 %v1573, 0.0
    %v1582 = vmax.f32 %v1574, 0.0
    %v1583 = vmax.f32 %v1575, 0.0
    %v1584 = vmax.f32 %v1576, 0.0
    %v1585 = vmax.f32 %v1577, 0.0
    %v1586 = vmax.f32 %v1578, 0.0
    %v1587 = vmax.f32 %v1579, 0.0
    %v1588 = vld [vmem:[%s6] sm:$0xff]
    %v1589 = vld [vmem:[#allocation2] sm:$0x1]
    %v1591 = vperm.slane %v1589, 0
    %1592 = vset.pattern.permute.xlu0 0
    %1593 = vperm.xlu0 %1592, %v1591
    %v1594 = vpop.permute.xlu0 %1593
    %v1597 = vsel %vm341, %v1588, 0
    %1599 = vmatpush.msra.mxu0 0.0
    %1600 = vmatpush.msra.mxu0 0.0
    %1601 = vmatpush.msra.mxu0 0.0
    %1602 = vmatpush.msra.mxu0 0.0
    %1603 = vmatpush.msra.mxu0 0.0
    %1604 = vmatpush.msra.mxu0 0.0
    %1605 = vmatpush.msra.mxu0 0.0
    %1606 = vmatpush.msra.mxu0 0.0
    %1607 = vmatpush.msra.mxu0 %v1587
    %1608 = vmatpush.msra.mxu0 %v1586
    %1609 = vmatpush.msra.mxu0 %v1585
    %1610 = vmatpush.msra.mxu0 %v1584
    %1611 = vmatpush.msra.mxu0 %v1583
    %1612 = vmatpush.msra.mxu0 %v1582
    %1613 = vmatpush.msra.mxu0 %v1581
    %1614 = vmatpush.msra.mxu0 %v1580
    %1615 = vmatmul.f32.gmra.mxu0 %v1597
    %v1616 = vpop.f32.mrf.mxu0
    %v1617 = vadd.f32 %v1594, %v1616
    %1618 = vdwg.mxu0
    %v1619 = vsub.f32 0.0, %v1617
    %v1620 = vmul.f32 %v1619, 1.442695
    %v1621 = vpow.pop %v1620
    %v1622 = vadd.f32 %v1621, 1.0
    %v1623 = vrcp.pop %v1622
    %v1624 = vmul.f32 %v1622, %v1623
    %v1625 = vsub.f32 1.0, %v1624
    %v1626 = vmul.f32 %v1623, %v1625
    %v1627 = vadd.f32 %v1623, %v1626
    %vm1628 = vweird.f32 %v1622
    %vm1629 = vweird.f32 %v1623
    %vm1630 = vmor %vm1628, %vm1629
    %v1631 = vsel %vm1630, %v1623, %v1627
    %v1632 = vand.u32 2147483647, %v1622
    %vm1633 = vcmp.eq.f32.partialorder %v1632, 8.507059e+37
    %v1634 = vand.u32 %v1622, 2147483648
    %v1635 = vor.u32 1.1754944e-38, %v1634
    %v1636 = vsel %vm1633, %v1635, %v1631
    %v1637 = vmul.f32 1.0, %v1636
    %vm1638 = vcmask 57344
    %1639 = vst.msk [vmem:[#allocation3] sm:$0x1] %vm1638, %v1637
    // Predicated region
    $region34: #{tpu_custom_call.1} parent=1 // pred_check
      _
    $region35: #{tpu_custom_call.1} parent=1 // pred_check_branch
      %1641 = sbr.rel (0) target = $region37
    $region36: #{tpu_custom_call.1} parent=1 // pred_region
      %1643 = vsyncadd [#allocation4], 0
      %s1645 = sshll.u32 [#allocation3], 4
      %s1646 = int_to_ptr.vmem [resolvable:$true] %s1645
      %s1647 = sshll.u32 %s8, 4
      %s1648 = int_to_ptr.hbm [resolvable:$true] %s1647
      %1650 = dma.vmem_to_hbm [thread:$0]  %s1646, 16, %s1648, [#allocation4]
    $region37: #{tpu_custom_call.1} parent=1 // pred_fallthru
      _
    // Predicated region
    $region38: #{tpu_custom_call.1} parent=1 // pred_check
      _
    $region39: #{tpu_custom_call.1} parent=1 // pred_check_branch
      %1652 = sbr.rel (0) target = $region41
    $region40: #{tpu_custom_call.1} parent=1 // pred_region
      %1654 = dma.done [#allocation4], 16
    $region41: #{tpu_custom_call.1} parent=1 // pred_fallthru
      _
    %1655 = vsyncpa [#allocation4], 1

</llo_original>
